<compile_context>
chip_gen: v6e
topology: v6e:2x2x1
jax: 0.10.0
libtpu: 0.0.40
codegen_flags: <defaults>
</compile_context>

<pallas_src>
import numpy as np
import jax
import jax.numpy as jnp
from jax.experimental import pallas as pl
from jax.experimental.pallas import tpu as pltpu

BN_EPS = 1e-5


# ----------------------------------------------------------------------------
# Bilinear interpolation matrix (PyTorch align_corners=False, upsampling path)
# ----------------------------------------------------------------------------
def bilinear_matrix(n_in: int, n_out: int) -> np.ndarray:
    # Matches torch.nn.Upsample(mode='bilinear', align_corners=False) for upsampling only
    # (no antialias / downsample path -- consistent with the module's scale_factor >= 1 config).
    scale = n_in / n_out
    A = np.zeros((n_out, n_in), dtype=np.float32)
    for i in range(n_out):
        src = max(scale * (i + 0.5) - 0.5, 0.0)
        i0 = min(int(np.floor(src)), n_in - 1)
        i1 = min(i0 + 1, n_in - 1)
        frac = src - i0
        A[i, i0] += 1.0 - frac
        A[i, i1] += frac
    return A


# ----------------------------------------------------------------------------
# Kernel 1: per batch element  y = ReLU(bilinear_upsample(conv1x1(x)))  + partial BN stats
# ----------------------------------------------------------------------------
def _make_fused_kernel(Kin: int, Kou: int):
    def kernel(w_ref, x_ref, ah_ref, awt_ref, y_ref, ssum_ref, ssq_ref):
        # w_ref  : SMEM [Kou, Kin]           (1x1 conv weights, scalar reads)
        # x_ref  : VMEM [1, Kin, Hin, Win]   (one batch element, W on lanes)
        # ah_ref : VMEM [Hout, Hin]          awt_ref: VMEM [Win, Wout]
        # y_ref  : VMEM [1, Kou, Hout, Wout] ssum/ssq: VMEM [1, Kou, 1]
        chans = []
        for ko in range(Kou):
            # 1x1 conv = channel mixing with SMEM scalar weights (upsample_first=True: conv first)
            c = w_ref[ko, 0] * x_ref[0, 0]
            for ki in range(1, Kin):
                c = c + w_ref[ko, ki] * x_ref[0, ki]
            # separable bilinear upsample: contract W (lanes) with Aw^T, then H with Ah
            t = jnp.dot(c, awt_ref[...], preferred_element_type=jnp.float32)   # [Hin, Wout]
            r = jnp.dot(ah_ref[...], t, preferred_element_type=jnp.float32)    # [Hout, Wout]
            chans.append(jnp.maximum(r, 0.0))                                  # ReLU (use_act=0)
        y = jnp.stack(chans, axis=0)                                           # [Kou, Hout, Wout]
        y_ref[0] = y
        # single-pass partial BatchNorm statistics for this batch element
        ssum_ref[0] = jnp.sum(jnp.sum(y, axis=2), axis=1, keepdims=True)       # [Kou, 1]
        ssq_ref[0] = jnp.sum(jnp.sum(y * y, axis=2), axis=1, keepdims=True)    # [Kou, 1]
    return kernel


# ----------------------------------------------------------------------------
# Kernel 2: apply the folded BatchNorm affine  out = y * scale[c] + shift[c]
# ----------------------------------------------------------------------------
def _make_bn_kernel(Kou: int):
    def kernel(scale_ref, shift_ref, y_ref, out_ref):
        # scale_ref / shift_ref : SMEM [Kou];  y_ref/out_ref : VMEM [1, Kou, Hout, Wout]
        for ko in range(Kou):
            out_ref[0, ko] = y_ref[0, ko] * scale_ref[ko] + shift_ref[ko]
    return kernel


# ----------------------------------------------------------------------------
# Wrapper: NCHW in / NCHW out
# ----------------------------------------------------------------------------
def decoder_unit_forward(x, conv_w, bn_gamma, bn_beta, Nou):
    """x: [N, Kin, Hin, Win]; conv_w: [Kou, Kin, 1, 1]; returns [N, Kou, Hout, Wout]."""
    N, Kin, Hin, Win = x.shape
    Kou = conv_w.shape[0]
    Hout, Wout = Nou

    x = x.astype(jnp.float32)
    w = conv_w.reshape(Kou, Kin).astype(jnp.float32)
    ah = jnp.asarray(bilinear_matrix(Hin, Hout))        # [Hout, Hin]
    awt = jnp.asarray(bilinear_matrix(Win, Wout).T)     # [Win, Wout]

    par = pltpu.CompilerParams(dimension_semantics=("parallel",))

    # ---- pass 1: conv -> upsample -> ReLU, plus per-batch per-channel sum / sumsq ----
    y, s_sum, s_sq = pl.pallas_call(
        _make_fused_kernel(Kin, Kou),
        grid=(N,),
        in_specs=[
            pl.BlockSpec(memory_space=pltpu.MemorySpace.SMEM),             # conv weight [Kou, Kin]
            pl.BlockSpec((1, Kin, Hin, Win), lambda n: (n, 0, 0, 0)),      # x
            pl.BlockSpec((Hout, Hin), lambda n: (0, 0)),                   # Ah
            pl.BlockSpec((Win, Wout), lambda n: (0, 0)),                   # Aw^T
        ],
        out_specs=(
            pl.BlockSpec((1, Kou, Hout, Wout), lambda n: (n, 0, 0, 0)),    # y
            pl.BlockSpec((1, Kou, 1), lambda n: (n, 0, 0)),                # sum
            pl.BlockSpec((1, Kou, 1), lambda n: (n, 0, 0)),                # sum of squares
        ),
        out_shape=(
            jax.ShapeDtypeStruct((N, Kou, Hout, Wout), jnp.float32),
            jax.ShapeDtypeStruct((N, Kou, 1), jnp.float32),
            jax.ShapeDtypeStruct((N, Kou, 1), jnp.float32),
        ),
        compiler_params=par,
    )(w, x, ah, awt)

    # ---- tiny cross-batch reduction + BN fold (plain JAX on [Kou] vectors) ----
    cnt = jnp.float32(N * Hout * Wout)
    mean = jnp.sum(s_sum[:, :, 0], axis=0) / cnt
    var = jnp.maximum(jnp.sum(s_sq[:, :, 0], axis=0) / cnt - mean * mean, 0.0)  # biased variance
    inv = jax.lax.rsqrt(var + BN_EPS)
    scale = bn_gamma.astype(jnp.float32) * inv
    shift = bn_beta.astype(jnp.float32) - mean * scale

    # ---- pass 2: per-channel affine (the actual BatchNorm normalize) ----
    out = pl.pallas_call(
        _make_bn_kernel(Kou),
        grid=(N,),
        in_specs=[
            pl.BlockSpec(memory_space=pltpu.MemorySpace.SMEM),             # scale [Kou]
            pl.BlockSpec(memory_space=pltpu.MemorySpace.SMEM),             # shift [Kou]
            pl.BlockSpec((1, Kou, Hout, Wout), lambda n: (n, 0, 0, 0)),    # y
        ],
        out_specs=pl.BlockSpec((1, Kou, Hout, Wout), lambda n: (n, 0, 0, 0)),
        out_shape=jax.ShapeDtypeStruct((N, Kou, Hout, Wout), jnp.float32),
        compiler_params=par,
    )(scale, shift, y)
    return out


# TODO(synk): non-default branches (use_sinc ResampleLayer/DCT, Swish/Sine/Tanh/AtacUnit
# activations, use_conv_bn in {-1,1}, NCo>1 reflection-padded conv) are not exercised by the
# default configuration and are not implemented here.
# TODO(synk): for very large spatial sizes, additionally tile Hout inside each batch block
# (the BN stats scheme already supports it since they are single-pass sums).


if __name__ == "__main__":
    # Small shapes consistent with the module defaults:
    #   Kin=4, Kou=8, Nin=(8,8), Nou=(16,16)  => scale_factor=2 bilinear upsample.
    N, Kin, Kou = 2, 4, 8
    Nin, Nou = (8, 8), (16, 16)

    key = jax.random.PRNGKey(0)
    kx, kw = jax.random.split(key)
    x = jax.random.normal(kx, (N, Kin, Nin[0], Nin[1]), dtype=jnp.float32)
    conv_w = jax.random.normal(kw, (Kou, Kin, 1, 1), dtype=jnp.float32) * (1.0 / np.sqrt(Kin))
    bn_gamma = jnp.ones((Kou,), dtype=jnp.float32)   # PyTorch BN init
    bn_beta = jnp.zeros((Kou,), dtype=jnp.float32)

    out = decoder_unit_forward(x, conv_w, bn_gamma, bn_beta, Nou)
    out = jax.block_until_ready(out)
    assert out.shape == (N, Kou, Nou[0], Nou[1]), out.shape
    assert jnp.all(jnp.isfinite(out))

    # pure-JAX reference (same bilinear operator) sanity check
    def reference(x, w, gamma, beta):
        c = jnp.einsum('oi,nihw->nohw', w.reshape(Kou, Kin), x)
        t = jnp.einsum('nohw,wW->nohW', c, jnp.asarray(bilinear_matrix(Nin[1], Nou[1]).T))
        u = jnp.einsum('Hh,nohw->noHw', jnp.asarray(bilinear_matrix(Nin[0], Nou[0])), t)
        r = jnp.maximum(u, 0.0)
        mean = r.mean(axis=(0, 2, 3), keepdims=True)
        var = ((r - mean) ** 2).mean(axis=(0, 2, 3), keepdims=True)
        return (r - mean) * jax.lax.rsqrt(var + BN_EPS) * gamma.reshape(1, -1, 1, 1) \
               + beta.reshape(1, -1, 1, 1)

    ref = jax.block_until_ready(reference(x, conv_w, bn_gamma, bn_beta))
    max_err = float(jnp.max(jnp.abs(out - ref)))
    assert max_err < 2e-3, f"max abs err {max_err}"
    print("KERNEL_OK")
</pallas_src>

<mosaic_0001>
module attributes {stable_mosaic.version = 11 : i64} {
  func.func @kernel(%arg0: i32, %arg1: memref<8x4xf32, #tpu.memory_space<smem>>, %arg2: memref<1x4x8x8xf32, #tpu.memory_space<vmem>>, %arg3: memref<16x8xf32, #tpu.memory_space<vmem>>, %arg4: memref<8x16xf32, #tpu.memory_space<vmem>>, %arg5: memref<1x8x16x16xf32, #tpu.memory_space<vmem>>, %arg6: memref<1x8x1xf32, #tpu.memory_space<vmem>>, %arg7: memref<1x8x1xf32, #tpu.memory_space<vmem>>) attributes {dimension_semantics = [#tpu.dimension_semantics<parallel>], iteration_bounds = array<i64: 2>, scalar_prefetch = 0 : i64, scratch_operands = 0 : i64, tpu.core_type = #tpu.core_type<tc>, window_params = [{transform_indices = @transform_0, window_bounds = array<i64: 8, 4>}, {transform_indices = @transform_1, window_bounds = array<i64: 1, 4, 8, 8>}, {pipeline_mode = #tpu.pipeline_mode<synchronous>, transform_indices = @transform_2, window_bounds = array<i64: 16, 8>}, {pipeline_mode = #tpu.pipeline_mode<synchronous>, transform_indices = @transform_3, window_bounds = array<i64: 8, 16>}, {transform_indices = @transform_4, window_bounds = array<i64: 1, 8, 16, 16>}, {transform_indices = @transform_5, window_bounds = array<i64: 1, 8, 1>}, {transform_indices = @transform_6, window_bounds = array<i64: 1, 8, 1>}]} {
    %c0 = arith.constant 0 : index
    %c0_0 = arith.constant 0 : index
    %0 = memref.load %arg1[%c0, %c0_0] : memref<8x4xf32, #tpu.memory_space<smem>>
    %c0_1 = arith.constant 0 : index
    %c0_2 = arith.constant 0 : index
    %c0_3 = arith.constant 0 : index
    %c0_4 = arith.constant 0 : index
    %1 = vector.load %arg2[%c0_1, %c0_2, %c0_3, %c0_4] : memref<1x4x8x8xf32, #tpu.memory_space<vmem>>, vector<1x1x8x8xf32>
    %2 = vector.shape_cast %1 : vector<1x1x8x8xf32> to vector<8x8xf32>
    %3 = vector.broadcast %0 : f32 to vector<8x8xf32>
    %4 = arith.mulf %3, %2 : vector<8x8xf32>
    %c0_5 = arith.constant 0 : index
    %c1 = arith.constant 1 : index
    %5 = memref.load %arg1[%c0_5, %c1] : memref<8x4xf32, #tpu.memory_space<smem>>
    %c0_6 = arith.constant 0 : index
    %c1_7 = arith.constant 1 : index
    %c0_8 = arith.constant 0 : index
    %c0_9 = arith.constant 0 : index
    %6 = vector.load %arg2[%c0_6, %c1_7, %c0_8, %c0_9] : memref<1x4x8x8xf32, #tpu.memory_space<vmem>>, vector<1x1x8x8xf32>
    %7 = vector.shape_cast %6 : vector<1x1x8x8xf32> to vector<8x8xf32>
    %8 = vector.broadcast %5 : f32 to vector<8x8xf32>
    %9 = arith.mulf %8, %7 : vector<8x8xf32>
    %10 = arith.addf %4, %9 : vector<8x8xf32>
    %c0_10 = arith.constant 0 : index
    %c2 = arith.constant 2 : index
    %11 = memref.load %arg1[%c0_10, %c2] : memref<8x4xf32, #tpu.memory_space<smem>>
    %c0_11 = arith.constant 0 : index
    %c2_12 = arith.constant 2 : index
    %c0_13 = arith.constant 0 : index
    %c0_14 = arith.constant 0 : index
    %12 = vector.load %arg2[%c0_11, %c2_12, %c0_13, %c0_14] : memref<1x4x8x8xf32, #tpu.memory_space<vmem>>, vector<1x1x8x8xf32>
    %13 = vector.shape_cast %12 : vector<1x1x8x8xf32> to vector<8x8xf32>
    %14 = vector.broadcast %11 : f32 to vector<8x8xf32>
    %15 = arith.mulf %14, %13 : vector<8x8xf32>
    %16 = arith.addf %10, %15 : vector<8x8xf32>
    %c0_15 = arith.constant 0 : index
    %c3 = arith.constant 3 : index
    %17 = memref.load %arg1[%c0_15, %c3] : memref<8x4xf32, #tpu.memory_space<smem>>
    %c0_16 = arith.constant 0 : index
    %c3_17 = arith.constant 3 : index
    %c0_18 = arith.constant 0 : index
    %c0_19 = arith.constant 0 : index
    %18 = vector.load %arg2[%c0_16, %c3_17, %c0_18, %c0_19] : memref<1x4x8x8xf32, #tpu.memory_space<vmem>>, vector<1x1x8x8xf32>
    %19 = vector.shape_cast %18 : vector<1x1x8x8xf32> to vector<8x8xf32>
    %20 = vector.broadcast %17 : f32 to vector<8x8xf32>
    %21 = arith.mulf %20, %19 : vector<8x8xf32>
    %22 = arith.addf %16, %21 : vector<8x8xf32>
    %c0_20 = arith.constant 0 : index
    %c0_21 = arith.constant 0 : index
    %23 = vector.load %arg4[%c0_20, %c0_21] : memref<8x16xf32, #tpu.memory_space<vmem>>, vector<8x16xf32>
    %cst = arith.constant dense<0.000000e+00> : vector<8x16xf32>
    %24 = tpu.matmul %22, %23, %cst {dimension_numbers = #tpu.dot_dimension_numbers<[1], [0], [0], [1], [0, 0, 1, 1], [], []>} : vector<8x8xf32>, vector<8x16xf32>, vector<8x16xf32> -> vector<8x16xf32>
    %c0_22 = arith.constant 0 : index
    %c0_23 = arith.constant 0 : index
    %25 = vector.load %arg3[%c0_22, %c0_23] : memref<16x8xf32, #tpu.memory_space<vmem>>, vector<16x8xf32>
    %cst_24 = arith.constant dense<0.000000e+00> : vector<16x16xf32>
    %26 = tpu.matmul %25, %24, %cst_24 {dimension_numbers = #tpu.dot_dimension_numbers<[1], [0], [0], [1], [0, 0, 1, 1], [], []>} : vector<16x8xf32>, vector<8x16xf32>, vector<16x16xf32> -> vector<16x16xf32>
    %cst_25 = arith.constant 0.000000e+00 : f32
    %27 = vector.broadcast %cst_25 : f32 to vector<16x16xf32>
    %28 = arith.maximumf %26, %27 : vector<16x16xf32>
    %c1_26 = arith.constant 1 : index
    %c0_27 = arith.constant 0 : index
    %29 = memref.load %arg1[%c1_26, %c0_27] : memref<8x4xf32, #tpu.memory_space<smem>>
    %c0_28 = arith.constant 0 : index
    %c0_29 = arith.constant 0 : index
    %c0_30 = arith.constant 0 : index
    %c0_31 = arith.constant 0 : index
    %30 = vector.load %arg2[%c0_28, %c0_29, %c0_30, %c0_31] : memref<1x4x8x8xf32, #tpu.memory_space<vmem>>, vector<1x1x8x8xf32>
    %31 = vector.shape_cast %30 : vector<1x1x8x8xf32> to vector<8x8xf32>
    %32 = vector.broadcast %29 : f32 to vector<8x8xf32>
    %33 = arith.mulf %32, %31 : vector<8x8xf32>
    %c1_32 = arith.constant 1 : index
    %c1_33 = arith.constant 1 : index
    %34 = memref.load %arg1[%c1_32, %c1_33] : memref<8x4xf32, #tpu.memory_space<smem>>
    %c0_34 = arith.constant 0 : index
    %c1_35 = arith.constant 1 : index
    %c0_36 = arith.constant 0 : index
    %c0_37 = arith.constant 0 : index
    %35 = vector.load %arg2[%c0_34, %c1_35, %c0_36, %c0_37] : memref<1x4x8x8xf32, #tpu.memory_space<vmem>>, vector<1x1x8x8xf32>
    %36 = vector.shape_cast %35 : vector<1x1x8x8xf32> to vector<8x8xf32>
    %37 = vector.broadcast %34 : f32 to vector<8x8xf32>
    %38 = arith.mulf %37, %36 : vector<8x8xf32>
    %39 = arith.addf %33, %38 : vector<8x8xf32>
    %c1_38 = arith.constant 1 : index
    %c2_39 = arith.constant 2 : index
    %40 = memref.load %arg1[%c1_38, %c2_39] : memref<8x4xf32, #tpu.memory_space<smem>>
    %c0_40 = arith.constant 0 : index
    %c2_41 = arith.constant 2 : index
    %c0_42 = arith.constant 0 : index
    %c0_43 = arith.constant 0 : index
    %41 = vector.load %arg2[%c0_40, %c2_41, %c0_42, %c0_43] : memref<1x4x8x8xf32, #tpu.memory_space<vmem>>, vector<1x1x8x8xf32>
    %42 = vector.shape_cast %41 : vector<1x1x8x8xf32> to vector<8x8xf32>
    %43 = vector.broadcast %40 : f32 to vector<8x8xf32>
    %44 = arith.mulf %43, %42 : vector<8x8xf32>
    %45 = arith.addf %39, %44 : vector<8x8xf32>
    %c1_44 = arith.constant 1 : index
    %c3_45 = arith.constant 3 : index
    %46 = memref.load %arg1[%c1_44, %c3_45] : memref<8x4xf32, #tpu.memory_space<smem>>
    %c0_46 = arith.constant 0 : index
    %c3_47 = arith.constant 3 : index
    %c0_48 = arith.constant 0 : index
    %c0_49 = arith.constant 0 : index
    %47 = vector.load %arg2[%c0_46, %c3_47, %c0_48, %c0_49] : memref<1x4x8x8xf32, #tpu.memory_space<vmem>>, vector<1x1x8x8xf32>
    %48 = vector.shape_cast %47 : vector<1x1x8x8xf32> to vector<8x8xf32>
    %49 = vector.broadcast %46 : f32 to vector<8x8xf32>
    %50 = arith.mulf %49, %48 : vector<8x8xf32>
    %51 = arith.addf %45, %50 : vector<8x8xf32>
    %c0_50 = arith.constant 0 : index
    %c0_51 = arith.constant 0 : index
    %52 = vector.load %arg4[%c0_50, %c0_51] : memref<8x16xf32, #tpu.memory_space<vmem>>, vector<8x16xf32>
    %cst_52 = arith.constant dense<0.000000e+00> : vector<8x16xf32>
    %53 = tpu.matmul %51, %52, %cst_52 {dimension_numbers = #tpu.dot_dimension_numbers<[1], [0], [0], [1], [0, 0, 1, 1], [], []>} : vector<8x8xf32>, vector<8x16xf32>, vector<8x16xf32> -> vector<8x16xf32>
    %c0_53 = arith.constant 0 : index
    %c0_54 = arith.constant 0 : index
    %54 = vector.load %arg3[%c0_53, %c0_54] : memref<16x8xf32, #tpu.memory_space<vmem>>, vector<16x8xf32>
    %cst_55 = arith.constant dense<0.000000e+00> : vector<16x16xf32>
    %55 = tpu.matmul %54, %53, %cst_55 {dimension_numbers = #tpu.dot_dimension_numbers<[1], [0], [0], [1], [0, 0, 1, 1], [], []>} : vector<16x8xf32>, vector<8x16xf32>, vector<16x16xf32> -> vector<16x16xf32>
    %cst_56 = arith.constant 0.000000e+00 : f32
    %56 = vector.broadcast %cst_56 : f32 to vector<16x16xf32>
    %57 = arith.maximumf %55, %56 : vector<16x16xf32>
    %c2_57 = arith.constant 2 : index
    %c0_58 = arith.constant 0 : index
    %58 = memref.load %arg1[%c2_57, %c0_58] : memref<8x4xf32, #tpu.memory_space<smem>>
    %c0_59 = arith.constant 0 : index
    %c0_60 = arith.constant 0 : index
    %c0_61 = arith.constant 0 : index
    %c0_62 = arith.constant 0 : index
    %59 = vector.load %arg2[%c0_59, %c0_60, %c0_61, %c0_62] : memref<1x4x8x8xf32, #tpu.memory_space<vmem>>, vector<1x1x8x8xf32>
    %60 = vector.shape_cast %59 : vector<1x1x8x8xf32> to vector<8x8xf32>
    %61 = vector.broadcast %58 : f32 to vector<8x8xf32>
    %62 = arith.mulf %61, %60 : vector<8x8xf32>
    %c2_63 = arith.constant 2 : index
    %c1_64 = arith.constant 1 : index
    %63 = memref.load %arg1[%c2_63, %c1_64] : memref<8x4xf32, #tpu.memory_space<smem>>
    %c0_65 = arith.constant 0 : index
    %c1_66 = arith.constant 1 : index
    %c0_67 = arith.constant 0 : index
    %c0_68 = arith.constant 0 : index
    %64 = vector.load %arg2[%c0_65, %c1_66, %c0_67, %c0_68] : memref<1x4x8x8xf32, #tpu.memory_space<vmem>>, vector<1x1x8x8xf32>
    %65 = vector.shape_cast %64 : vector<1x1x8x8xf32> to vector<8x8xf32>
    %66 = vector.broadcast %63 : f32 to vector<8x8xf32>
    %67 = arith.mulf %66, %65 : vector<8x8xf32>
    %68 = arith.addf %62, %67 : vector<8x8xf32>
    %c2_69 = arith.constant 2 : index
    %c2_70 = arith.constant 2 : index
    %69 = memref.load %arg1[%c2_69, %c2_70] : memref<8x4xf32, #tpu.memory_space<smem>>
    %c0_71 = arith.constant 0 : index
    %c2_72 = arith.constant 2 : index
    %c0_73 = arith.constant 0 : index
    %c0_74 = arith.constant 0 : index
    %70 = vector.load %arg2[%c0_71, %c2_72, %c0_73, %c0_74] : memref<1x4x8x8xf32, #tpu.memory_space<vmem>>, vector<1x1x8x8xf32>
    %71 = vector.shape_cast %70 : vector<1x1x8x8xf32> to vector<8x8xf32>
    %72 = vector.broadcast %69 : f32 to vector<8x8xf32>
    %73 = arith.mulf %72, %71 : vector<8x8xf32>
    %74 = arith.addf %68, %73 : vector<8x8xf32>
    %c2_75 = arith.constant 2 : index
    %c3_76 = arith.constant 3 : index
    %75 = memref.load %arg1[%c2_75, %c3_76] : memref<8x4xf32, #tpu.memory_space<smem>>
    %c0_77 = arith.constant 0 : index
    %c3_78 = arith.constant 3 : index
    %c0_79 = arith.constant 0 : index
    %c0_80 = arith.constant 0 : index
    %76 = vector.load %arg2[%c0_77, %c3_78, %c0_79, %c0_80] : memref<1x4x8x8xf32, #tpu.memory_space<vmem>>, vector<1x1x8x8xf32>
    %77 = vector.shape_cast %76 : vector<1x1x8x8xf32> to vector<8x8xf32>
    %78 = vector.broadcast %75 : f32 to vector<8x8xf32>
    %79 = arith.mulf %78, %77 : vector<8x8xf32>
    %80 = arith.addf %74, %79 : vector<8x8xf32>
    %c0_81 = arith.constant 0 : index
    %c0_82 = arith.constant 0 : index
    %81 = vector.load %arg4[%c0_81, %c0_82] : memref<8x16xf32, #tpu.memory_space<vmem>>, vector<8x16xf32>
    %cst_83 = arith.constant dense<0.000000e+00> : vector<8x16xf32>
    %82 = tpu.matmul %80, %81, %cst_83 {dimension_numbers = #tpu.dot_dimension_numbers<[1], [0], [0], [1], [0, 0, 1, 1], [], []>} : vector<8x8xf32>, vector<8x16xf32>, vector<8x16xf32> -> vector<8x16xf32>
    %c0_84 = arith.constant 0 : index
    %c0_85 = arith.constant 0 : index
    %83 = vector.load %arg3[%c0_84, %c0_85] : memref<16x8xf32, #tpu.memory_space<vmem>>, vector<16x8xf32>
    %cst_86 = arith.constant dense<0.000000e+00> : vector<16x16xf32>
    %84 = tpu.matmul %83, %82, %cst_86 {dimension_numbers = #tpu.dot_dimension_numbers<[1], [0], [0], [1], [0, 0, 1, 1], [], []>} : vector<16x8xf32>, vector<8x16xf32>, vector<16x16xf32> -> vector<16x16xf32>
    %cst_87 = arith.constant 0.000000e+00 : f32
    %85 = vector.broadcast %cst_87 : f32 to vector<16x16xf32>
    %86 = arith.maximumf %84, %85 : vector<16x16xf32>
    %c3_88 = arith.constant 3 : index
    %c0_89 = arith.constant 0 : index
    %87 = memref.load %arg1[%c3_88, %c0_89] : memref<8x4xf32, #tpu.memory_space<smem>>
    %c0_90 = arith.constant 0 : index
    %c0_91 = arith.constant 0 : index
    %c0_92 = arith.constant 0 : index
    %c0_93 = arith.constant 0 : index
    %88 = vector.load %arg2[%c0_90, %c0_91, %c0_92, %c0_93] : memref<1x4x8x8xf32, #tpu.memory_space<vmem>>, vector<1x1x8x8xf32>
    %89 = vector.shape_cast %88 : vector<1x1x8x8xf32> to vector<8x8xf32>
    %90 = vector.broadcast %87 : f32 to vector<8x8xf32>
    %91 = arith.mulf %90, %89 : vector<8x8xf32>
    %c3_94 = arith.constant 3 : index
    %c1_95 = arith.constant 1 : index
    %92 = memref.load %arg1[%c3_94, %c1_95] : memref<8x4xf32, #tpu.memory_space<smem>>
    %c0_96 = arith.constant 0 : index
    %c1_97 = arith.constant 1 : index
    %c0_98 = arith.constant 0 : index
    %c0_99 = arith.constant 0 : index
    %93 = vector.load %arg2[%c0_96, %c1_97, %c0_98, %c0_99] : memref<1x4x8x8xf32, #tpu.memory_space<vmem>>, vector<1x1x8x8xf32>
    %94 = vector.shape_cast %93 : vector<1x1x8x8xf32> to vector<8x8xf32>
    %95 = vector.broadcast %92 : f32 to vector<8x8xf32>
    %96 = arith.mulf %95, %94 : vector<8x8xf32>
    %97 = arith.addf %91, %96 : vector<8x8xf32>
    %c3_100 = arith.constant 3 : index
    %c2_101 = arith.constant 2 : index
    %98 = memref.load %arg1[%c3_100, %c2_101] : memref<8x4xf32, #tpu.memory_space<smem>>
    %c0_102 = arith.constant 0 : index
    %c2_103 = arith.constant 2 : index
    %c0_104 = arith.constant 0 : index
    %c0_105 = arith.constant 0 : index
    %99 = vector.load %arg2[%c0_102, %c2_103, %c0_104, %c0_105] : memref<1x4x8x8xf32, #tpu.memory_space<vmem>>, vector<1x1x8x8xf32>
    %100 = vector.shape_cast %99 : vector<1x1x8x8xf32> to vector<8x8xf32>
    %101 = vector.broadcast %98 : f32 to vector<8x8xf32>
    %102 = arith.mulf %101, %100 : vector<8x8xf32>
    %103 = arith.addf %97, %102 : vector<8x8xf32>
    %c3_106 = arith.constant 3 : index
    %c3_107 = arith.constant 3 : index
    %104 = memref.load %arg1[%c3_106, %c3_107] : memref<8x4xf32, #tpu.memory_space<smem>>
    %c0_108 = arith.constant 0 : index
    %c3_109 = arith.constant 3 : index
    %c0_110 = arith.constant 0 : index
    %c0_111 = arith.constant 0 : index
    %105 = vector.load %arg2[%c0_108, %c3_109, %c0_110, %c0_111] : memref<1x4x8x8xf32, #tpu.memory_space<vmem>>, vector<1x1x8x8xf32>
    %106 = vector.shape_cast %105 : vector<1x1x8x8xf32> to vector<8x8xf32>
    %107 = vector.broadcast %104 : f32 to vector<8x8xf32>
    %108 = arith.mulf %107, %106 : vector<8x8xf32>
    %109 = arith.addf %103, %108 : vector<8x8xf32>
    %c0_112 = arith.constant 0 : index
    %c0_113 = arith.constant 0 : index
    %110 = vector.load %arg4[%c0_112, %c0_113] : memref<8x16xf32, #tpu.memory_space<vmem>>, vector<8x16xf32>
    %cst_114 = arith.constant dense<0.000000e+00> : vector<8x16xf32>
    %111 = tpu.matmul %109, %110, %cst_114 {dimension_numbers = #tpu.dot_dimension_numbers<[1], [0], [0], [1], [0, 0, 1, 1], [], []>} : vector<8x8xf32>, vector<8x16xf32>, vector<8x16xf32> -> vector<8x16xf32>
    %c0_115 = arith.constant 0 : index
    %c0_116 = arith.constant 0 : index
    %112 = vector.load %arg3[%c0_115, %c0_116] : memref<16x8xf32, #tpu.memory_space<vmem>>, vector<16x8xf32>
    %cst_117 = arith.constant dense<0.000000e+00> : vector<16x16xf32>
    %113 = tpu.matmul %112, %111, %cst_117 {dimension_numbers = #tpu.dot_dimension_numbers<[1], [0], [0], [1], [0, 0, 1, 1], [], []>} : vector<16x8xf32>, vector<8x16xf32>, vector<16x16xf32> -> vector<16x16xf32>
    %cst_118 = arith.constant 0.000000e+00 : f32
    %114 = vector.broadcast %cst_118 : f32 to vector<16x16xf32>
    %115 = arith.maximumf %113, %114 : vector<16x16xf32>
    %c4 = arith.constant 4 : index
    %c0_119 = arith.constant 0 : index
    %116 = memref.load %arg1[%c4, %c0_119] : memref<8x4xf32, #tpu.memory_space<smem>>
    %c0_120 = arith.constant 0 : index
    %c0_121 = arith.constant 0 : index
    %c0_122 = arith.constant 0 : index
    %c0_123 = arith.constant 0 : index
    %117 = vector.load %arg2[%c0_120, %c0_121, %c0_122, %c0_123] : memref<1x4x8x8xf32, #tpu.memory_space<vmem>>, vector<1x1x8x8xf32>
    %118 = vector.shape_cast %117 : vector<1x1x8x8xf32> to vector<8x8xf32>
    %119 = vector.broadcast %116 : f32 to vector<8x8xf32>
    %120 = arith.mulf %119, %118 : vector<8x8xf32>
    %c4_124 = arith.constant 4 : index
    %c1_125 = arith.constant 1 : index
    %121 = memref.load %arg1[%c4_124, %c1_125] : memref<8x4xf32, #tpu.memory_space<smem>>
    %c0_126 = arith.constant 0 : index
    %c1_127 = arith.constant 1 : index
    %c0_128 = arith.constant 0 : index
    %c0_129 = arith.constant 0 : index
    %122 = vector.load %arg2[%c0_126, %c1_127, %c0_128, %c0_129] : memref<1x4x8x8xf32, #tpu.memory_space<vmem>>, vector<1x1x8x8xf32>
    %123 = vector.shape_cast %122 : vector<1x1x8x8xf32> to vector<8x8xf32>
    %124 = vector.broadcast %121 : f32 to vector<8x8xf32>
    %125 = arith.mulf %124, %123 : vector<8x8xf32>
    %126 = arith.addf %120, %125 : vector<8x8xf32>
    %c4_130 = arith.constant 4 : index
    %c2_131 = arith.constant 2 : index
    %127 = memref.load %arg1[%c4_130, %c2_131] : memref<8x4xf32, #tpu.memory_space<smem>>
    %c0_132 = arith.constant 0 : index
    %c2_133 = arith.constant 2 : index
    %c0_134 = arith.constant 0 : index
    %c0_135 = arith.constant 0 : index
    %128 = vector.load %arg2[%c0_132, %c2_133, %c0_134, %c0_135] : memref<1x4x8x8xf32, #tpu.memory_space<vmem>>, vector<1x1x8x8xf32>
    %129 = vector.shape_cast %128 : vector<1x1x8x8xf32> to vector<8x8xf32>
    %130 = vector.broadcast %127 : f32 to vector<8x8xf32>
    %131 = arith.mulf %130, %129 : vector<8x8xf32>
    %132 = arith.addf %126, %131 : vector<8x8xf32>
    %c4_136 = arith.constant 4 : index
    %c3_137 = arith.constant 3 : index
    %133 = memref.load %arg1[%c4_136, %c3_137] : memref<8x4xf32, #tpu.memory_space<smem>>
    %c0_138 = arith.constant 0 : index
    %c3_139 = arith.constant 3 : index
    %c0_140 = arith.constant 0 : index
    %c0_141 = arith.constant 0 : index
    %134 = vector.load %arg2[%c0_138, %c3_139, %c0_140, %c0_141] : memref<1x4x8x8xf32, #tpu.memory_space<vmem>>, vector<1x1x8x8xf32>
    %135 = vector.shape_cast %134 : vector<1x1x8x8xf32> to vector<8x8xf32>
    %136 = vector.broadcast %133 : f32 to vector<8x8xf32>
    %137 = arith.mulf %136, %135 : vector<8x8xf32>
    %138 = arith.addf %132, %137 : vector<8x8xf32>
    %c0_142 = arith.constant 0 : index
    %c0_143 = arith.constant 0 : index
    %139 = vector.load %arg4[%c0_142, %c0_143] : memref<8x16xf32, #tpu.memory_space<vmem>>, vector<8x16xf32>
    %cst_144 = arith.constant dense<0.000000e+00> : vector<8x16xf32>
    %140 = tpu.matmul %138, %139, %cst_144 {dimension_numbers = #tpu.dot_dimension_numbers<[1], [0], [0], [1], [0, 0, 1, 1], [], []>} : vector<8x8xf32>, vector<8x16xf32>, vector<8x16xf32> -> vector<8x16xf32>
    %c0_145 = arith.constant 0 : index
    %c0_146 = arith.constant 0 : index
    %141 = vector.load %arg3[%c0_145, %c0_146] : memref<16x8xf32, #tpu.memory_space<vmem>>, vector<16x8xf32>
    %cst_147 = arith.constant dense<0.000000e+00> : vector<16x16xf32>
    %142 = tpu.matmul %141, %140, %cst_147 {dimension_numbers = #tpu.dot_dimension_numbers<[1], [0], [0], [1], [0, 0, 1, 1], [], []>} : vector<16x8xf32>, vector<8x16xf32>, vector<16x16xf32> -> vector<16x16xf32>
    %cst_148 = arith.constant 0.000000e+00 : f32
    %143 = vector.broadcast %cst_148 : f32 to vector<16x16xf32>
    %144 = arith.maximumf %142, %143 : vector<16x16xf32>
    %c5 = arith.constant 5 : index
    %c0_149 = arith.constant 0 : index
    %145 = memref.load %arg1[%c5, %c0_149] : memref<8x4xf32, #tpu.memory_space<smem>>
    %c0_150 = arith.constant 0 : index
    %c0_151 = arith.constant 0 : index
    %c0_152 = arith.constant 0 : index
    %c0_153 = arith.constant 0 : index
    %146 = vector.load %arg2[%c0_150, %c0_151, %c0_152, %c0_153] : memref<1x4x8x8xf32, #tpu.memory_space<vmem>>, vector<1x1x8x8xf32>
    %147 = vector.shape_cast %146 : vector<1x1x8x8xf32> to vector<8x8xf32>
    %148 = vector.broadcast %145 : f32 to vector<8x8xf32>
    %149 = arith.mulf %148, %147 : vector<8x8xf32>
    %c5_154 = arith.constant 5 : index
    %c1_155 = arith.constant 1 : index
    %150 = memref.load %arg1[%c5_154, %c1_155] : memref<8x4xf32, #tpu.memory_space<smem>>
    %c0_156 = arith.constant 0 : index
    %c1_157 = arith.constant 1 : index
    %c0_158 = arith.constant 0 : index
    %c0_159 = arith.constant 0 : index
    %151 = vector.load %arg2[%c0_156, %c1_157, %c0_158, %c0_159] : memref<1x4x8x8xf32, #tpu.memory_space<vmem>>, vector<1x1x8x8xf32>
    %152 = vector.shape_cast %151 : vector<1x1x8x8xf32> to vector<8x8xf32>
    %153 = vector.broadcast %150 : f32 to vector<8x8xf32>
    %154 = arith.mulf %153, %152 : vector<8x8xf32>
    %155 = arith.addf %149, %154 : vector<8x8xf32>
    %c5_160 = arith.constant 5 : index
    %c2_161 = arith.constant 2 : index
    %156 = memref.load %arg1[%c5_160, %c2_161] : memref<8x4xf32, #tpu.memory_space<smem>>
    %c0_162 = arith.constant 0 : index
    %c2_163 = arith.constant 2 : index
    %c0_164 = arith.constant 0 : index
    %c0_165 = arith.constant 0 : index
    %157 = vector.load %arg2[%c0_162, %c2_163, %c0_164, %c0_165] : memref<1x4x8x8xf32, #tpu.memory_space<vmem>>, vector<1x1x8x8xf32>
    %158 = vector.shape_cast %157 : vector<1x1x8x8xf32> to vector<8x8xf32>
    %159 = vector.broadcast %156 : f32 to vector<8x8xf32>
    %160 = arith.mulf %159, %158 : vector<8x8xf32>
    %161 = arith.addf %155, %160 : vector<8x8xf32>
    %c5_166 = arith.constant 5 : index
    %c3_167 = arith.constant 3 : index
    %162 = memref.load %arg1[%c5_166, %c3_167] : memref<8x4xf32, #tpu.memory_space<smem>>
    %c0_168 = arith.constant 0 : index
    %c3_169 = arith.constant 3 : index
    %c0_170 = arith.constant 0 : index
    %c0_171 = arith.constant 0 : index
    %163 = vector.load %arg2[%c0_168, %c3_169, %c0_170, %c0_171] : memref<1x4x8x8xf32, #tpu.memory_space<vmem>>, vector<1x1x8x8xf32>
    %164 = vector.shape_cast %163 : vector<1x1x8x8xf32> to vector<8x8xf32>
    %165 = vector.broadcast %162 : f32 to vector<8x8xf32>
    %166 = arith.mulf %165, %164 : vector<8x8xf32>
    %167 = arith.addf %161, %166 : vector<8x8xf32>
    %c0_172 = arith.constant 0 : index
    %c0_173 = arith.constant 0 : index
    %168 = vector.load %arg4[%c0_172, %c0_173] : memref<8x16xf32, #tpu.memory_space<vmem>>, vector<8x16xf32>
    %cst_174 = arith.constant dense<0.000000e+00> : vector<8x16xf32>
    %169 = tpu.matmul %167, %168, %cst_174 {dimension_numbers = #tpu.dot_dimension_numbers<[1], [0], [0], [1], [0, 0, 1, 1], [], []>} : vector<8x8xf32>, vector<8x16xf32>, vector<8x16xf32> -> vector<8x16xf32>
    %c0_175 = arith.constant 0 : index
    %c0_176 = arith.constant 0 : index
    %170 = vector.load %arg3[%c0_175, %c0_176] : memref<16x8xf32, #tpu.memory_space<vmem>>, vector<16x8xf32>
    %cst_177 = arith.constant dense<0.000000e+00> : vector<16x16xf32>
    %171 = tpu.matmul %170, %169, %cst_177 {dimension_numbers = #tpu.dot_dimension_numbers<[1], [0], [0], [1], [0, 0, 1, 1], [], []>} : vector<16x8xf32>, vector<8x16xf32>, vector<16x16xf32> -> vector<16x16xf32>
    %cst_178 = arith.constant 0.000000e+00 : f32
    %172 = vector.broadcast %cst_178 : f32 to vector<16x16xf32>
    %173 = arith.maximumf %171, %172 : vector<16x16xf32>
    %c6 = arith.constant 6 : index
    %c0_179 = arith.constant 0 : index
    %174 = memref.load %arg1[%c6, %c0_179] : memref<8x4xf32, #tpu.memory_space<smem>>
    %c0_180 = arith.constant 0 : index
    %c0_181 = arith.constant 0 : index
    %c0_182 = arith.constant 0 : index
    %c0_183 = arith.constant 0 : index
    %175 = vector.load %arg2[%c0_180, %c0_181, %c0_182, %c0_183] : memref<1x4x8x8xf32, #tpu.memory_space<vmem>>, vector<1x1x8x8xf32>
    %176 = vector.shape_cast %175 : vector<1x1x8x8xf32> to vector<8x8xf32>
    %177 = vector.broadcast %174 : f32 to vector<8x8xf32>
    %178 = arith.mulf %177, %176 : vector<8x8xf32>
    %c6_184 = arith.constant 6 : index
    %c1_185 = arith.constant 1 : index
    %179 = memref.load %arg1[%c6_184, %c1_185] : memref<8x4xf32, #tpu.memory_space<smem>>
    %c0_186 = arith.constant 0 : index
    %c1_187 = arith.constant 1 : index
    %c0_188 = arith.constant 0 : index
    %c0_189 = arith.constant 0 : index
    %180 = vector.load %arg2[%c0_186, %c1_187, %c0_188, %c0_189] : memref<1x4x8x8xf32, #tpu.memory_space<vmem>>, vector<1x1x8x8xf32>
    %181 = vector.shape_cast %180 : vector<1x1x8x8xf32> to vector<8x8xf32>
    %182 = vector.broadcast %179 : f32 to vector<8x8xf32>
    %183 = arith.mulf %182, %181 : vector<8x8xf32>
    %184 = arith.addf %178, %183 : vector<8x8xf32>
    %c6_190 = arith.constant 6 : index
    %c2_191 = arith.constant 2 : index
    %185 = memref.load %arg1[%c6_190, %c2_191] : memref<8x4xf32, #tpu.memory_space<smem>>
    %c0_192 = arith.constant 0 : index
    %c2_193 = arith.constant 2 : index
    %c0_194 = arith.constant 0 : index
    %c0_195 = arith.constant 0 : index
    %186 = vector.load %arg2[%c0_192, %c2_193, %c0_194, %c0_195] : memref<1x4x8x8xf32, #tpu.memory_space<vmem>>, vector<1x1x8x8xf32>
    %187 = vector.shape_cast %186 : vector<1x1x8x8xf32> to vector<8x8xf32>
    %188 = vector.broadcast %185 : f32 to vector<8x8xf32>
    %189 = arith.mulf %188, %187 : vector<8x8xf32>
    %190 = arith.addf %184, %189 : vector<8x8xf32>
    %c6_196 = arith.constant 6 : index
    %c3_197 = arith.constant 3 : index
    %191 = memref.load %arg1[%c6_196, %c3_197] : memref<8x4xf32, #tpu.memory_space<smem>>
    %c0_198 = arith.constant 0 : index
    %c3_199 = arith.constant 3 : index
    %c0_200 = arith.constant 0 : index
    %c0_201 = arith.constant 0 : index
    %192 = vector.load %arg2[%c0_198, %c3_199, %c0_200, %c0_201] : memref<1x4x8x8xf32, #tpu.memory_space<vmem>>, vector<1x1x8x8xf32>
    %193 = vector.shape_cast %192 : vector<1x1x8x8xf32> to vector<8x8xf32>
    %194 = vector.broadcast %191 : f32 to vector<8x8xf32>
    %195 = arith.mulf %194, %193 : vector<8x8xf32>
    %196 = arith.addf %190, %195 : vector<8x8xf32>
    %c0_202 = arith.constant 0 : index
    %c0_203 = arith.constant 0 : index
    %197 = vector.load %arg4[%c0_202, %c0_203] : memref<8x16xf32, #tpu.memory_space<vmem>>, vector<8x16xf32>
    %cst_204 = arith.constant dense<0.000000e+00> : vector<8x16xf32>
    %198 = tpu.matmul %196, %197, %cst_204 {dimension_numbers = #tpu.dot_dimension_numbers<[1], [0], [0], [1], [0, 0, 1, 1], [], []>} : vector<8x8xf32>, vector<8x16xf32>, vector<8x16xf32> -> vector<8x16xf32>
    %c0_205 = arith.constant 0 : index
    %c0_206 = arith.constant 0 : index
    %199 = vector.load %arg3[%c0_205, %c0_206] : memref<16x8xf32, #tpu.memory_space<vmem>>, vector<16x8xf32>
    %cst_207 = arith.constant dense<0.000000e+00> : vector<16x16xf32>
    %200 = tpu.matmul %199, %198, %cst_207 {dimension_numbers = #tpu.dot_dimension_numbers<[1], [0], [0], [1], [0, 0, 1, 1], [], []>} : vector<16x8xf32>, vector<8x16xf32>, vector<16x16xf32> -> vector<16x16xf32>
    %cst_208 = arith.constant 0.000000e+00 : f32
    %201 = vector.broadcast %cst_208 : f32 to vector<16x16xf32>
    %202 = arith.maximumf %200, %201 : vector<16x16xf32>
    %c7 = arith.constant 7 : index
    %c0_209 = arith.constant 0 : index
    %203 = memref.load %arg1[%c7, %c0_209] : memref<8x4xf32, #tpu.memory_space<smem>>
    %c0_210 = arith.constant 0 : index
    %c0_211 = arith.constant 0 : index
    %c0_212 = arith.constant 0 : index
    %c0_213 = arith.constant 0 : index
    %204 = vector.load %arg2[%c0_210, %c0_211, %c0_212, %c0_213] : memref<1x4x8x8xf32, #tpu.memory_space<vmem>>, vector<1x1x8x8xf32>
    %205 = vector.shape_cast %204 : vector<1x1x8x8xf32> to vector<8x8xf32>
    %206 = vector.broadcast %203 : f32 to vector<8x8xf32>
    %207 = arith.mulf %206, %205 : vector<8x8xf32>
    %c7_214 = arith.constant 7 : index
    %c1_215 = arith.constant 1 : index
    %208 = memref.load %arg1[%c7_214, %c1_215] : memref<8x4xf32, #tpu.memory_space<smem>>
    %c0_216 = arith.constant 0 : index
    %c1_217 = arith.constant 1 : index
    %c0_218 = arith.constant 0 : index
    %c0_219 = arith.constant 0 : index
    %209 = vector.load %arg2[%c0_216, %c1_217, %c0_218, %c0_219] : memref<1x4x8x8xf32, #tpu.memory_space<vmem>>, vector<1x1x8x8xf32>
    %210 = vector.shape_cast %209 : vector<1x1x8x8xf32> to vector<8x8xf32>
    %211 = vector.broadcast %208 : f32 to vector<8x8xf32>
    %212 = arith.mulf %211, %210 : vector<8x8xf32>
    %213 = arith.addf %207, %212 : vector<8x8xf32>
    %c7_220 = arith.constant 7 : index
    %c2_221 = arith.constant 2 : index
    %214 = memref.load %arg1[%c7_220, %c2_221] : memref<8x4xf32, #tpu.memory_space<smem>>
    %c0_222 = arith.constant 0 : index
    %c2_223 = arith.constant 2 : index
    %c0_224 = arith.constant 0 : index
    %c0_225 = arith.constant 0 : index
    %215 = vector.load %arg2[%c0_222, %c2_223, %c0_224, %c0_225] : memref<1x4x8x8xf32, #tpu.memory_space<vmem>>, vector<1x1x8x8xf32>
    %216 = vector.shape_cast %215 : vector<1x1x8x8xf32> to vector<8x8xf32>
    %217 = vector.broadcast %214 : f32 to vector<8x8xf32>
    %218 = arith.mulf %217, %216 : vector<8x8xf32>
    %219 = arith.addf %213, %218 : vector<8x8xf32>
    %c7_226 = arith.constant 7 : index
    %c3_227 = arith.constant 3 : index
    %220 = memref.load %arg1[%c7_226, %c3_227] : memref<8x4xf32, #tpu.memory_space<smem>>
    %c0_228 = arith.constant 0 : index
    %c3_229 = arith.constant 3 : index
    %c0_230 = arith.constant 0 : index
    %c0_231 = arith.constant 0 : index
    %221 = vector.load %arg2[%c0_228, %c3_229, %c0_230, %c0_231] : memref<1x4x8x8xf32, #tpu.memory_space<vmem>>, vector<1x1x8x8xf32>
    %222 = vector.shape_cast %221 : vector<1x1x8x8xf32> to vector<8x8xf32>
    %223 = vector.broadcast %220 : f32 to vector<8x8xf32>
    %224 = arith.mulf %223, %222 : vector<8x8xf32>
    %225 = arith.addf %219, %224 : vector<8x8xf32>
    %c0_232 = arith.constant 0 : index
    %c0_233 = arith.constant 0 : index
    %226 = vector.load %arg4[%c0_232, %c0_233] : memref<8x16xf32, #tpu.memory_space<vmem>>, vector<8x16xf32>
    %cst_234 = arith.constant dense<0.000000e+00> : vector<8x16xf32>
    %227 = tpu.matmul %225, %226, %cst_234 {dimension_numbers = #tpu.dot_dimension_numbers<[1], [0], [0], [1], [0, 0, 1, 1], [], []>} : vector<8x8xf32>, vector<8x16xf32>, vector<8x16xf32> -> vector<8x16xf32>
    %c0_235 = arith.constant 0 : index
    %c0_236 = arith.constant 0 : index
    %228 = vector.load %arg3[%c0_235, %c0_236] : memref<16x8xf32, #tpu.memory_space<vmem>>, vector<16x8xf32>
    %cst_237 = arith.constant dense<0.000000e+00> : vector<16x16xf32>
    %229 = tpu.matmul %228, %227, %cst_237 {dimension_numbers = #tpu.dot_dimension_numbers<[1], [0], [0], [1], [0, 0, 1, 1], [], []>} : vector<16x8xf32>, vector<8x16xf32>, vector<16x16xf32> -> vector<16x16xf32>
    %cst_238 = arith.constant 0.000000e+00 : f32
    %230 = vector.broadcast %cst_238 : f32 to vector<16x16xf32>
    %231 = arith.maximumf %229, %230 : vector<16x16xf32>
    %232 = vector.shape_cast %28 : vector<16x16xf32> to vector<1x16x16xf32>
    %233 = vector.shape_cast %57 : vector<16x16xf32> to vector<1x16x16xf32>
    %234 = vector.shape_cast %86 : vector<16x16xf32> to vector<1x16x16xf32>
    %235 = vector.shape_cast %115 : vector<16x16xf32> to vector<1x16x16xf32>
    %236 = vector.shape_cast %144 : vector<16x16xf32> to vector<1x16x16xf32>
    %237 = vector.shape_cast %173 : vector<16x16xf32> to vector<1x16x16xf32>
    %238 = vector.shape_cast %202 : vector<16x16xf32> to vector<1x16x16xf32>
    %239 = vector.shape_cast %231 : vector<16x16xf32> to vector<1x16x16xf32>
    %240 = tpu.concatenate %232, %233, %234, %235, %236, %237, %238, %239 in 0 : vector<1x16x16xf32>, vector<1x16x16xf32>, vector<1x16x16xf32>, vector<1x16x16xf32>, vector<1x16x16xf32>, vector<1x16x16xf32>, vector<1x16x16xf32>, vector<1x16x16xf32> -> vector<8x16x16xf32>
    %c0_239 = arith.constant 0 : index
    %c0_240 = arith.constant 0 : index
    %c0_241 = arith.constant 0 : index
    %c0_242 = arith.constant 0 : index
    %241 = vector.load %arg5[%c0_239, %c0_240, %c0_241, %c0_242] : memref<1x8x16x16xf32, #tpu.memory_space<vmem>>, vector<1x8x16x16xf32>
    %242 = vector.shape_cast %241 : vector<1x8x16x16xf32> to vector<8x16x16xf32>
    %243 = vector.shape_cast %240 : vector<8x16x16xf32> to vector<1x8x16x16xf32>
    tpu.vector_store %arg5[%c0_239, %c0_240, %c0_241, %c0_242], %243 {strides = array<i32>} : memref<1x8x16x16xf32, #tpu.memory_space<vmem>>, vector<1x8x16x16xf32>,
    %cst_243 = arith.constant dense<0.000000e+00> : vector<8x16xf32>
    %244 = vector.multi_reduction <add>, %240, %cst_243 [2] : vector<8x16x16xf32> to vector<8x16xf32>
    %cst_244 = arith.constant dense<0.000000e+00> : vector<8xf32>
    %245 = vector.multi_reduction <add>, %244, %cst_244 [1] : vector<8x16xf32> to vector<8xf32>
    %246 = vector.shape_cast %245 : vector<8xf32> to vector<8x1xf32>
    %c0_245 = arith.constant 0 : index
    %c0_246 = arith.constant 0 : index
    %c0_247 = arith.constant 0 : index
    %247 = vector.load %arg6[%c0_245, %c0_246, %c0_247] : memref<1x8x1xf32, #tpu.memory_space<vmem>>, vector<1x8x1xf32>
    %248 = vector.shape_cast %247 : vector<1x8x1xf32> to vector<8x1xf32>
    %249 = vector.shape_cast %246 : vector<8x1xf32> to vector<1x8x1xf32>
    tpu.vector_store %arg6[%c0_245, %c0_246, %c0_247], %249 {strides = array<i32>} : memref<1x8x1xf32, #tpu.memory_space<vmem>>, vector<1x8x1xf32>,
    %250 = arith.mulf %240, %240 : vector<8x16x16xf32>
    %cst_248 = arith.constant dense<0.000000e+00> : vector<8x16xf32>
    %251 = vector.multi_reduction <add>, %250, %cst_248 [2] : vector<8x16x16xf32> to vector<8x16xf32>
    %cst_249 = arith.constant dense<0.000000e+00> : vector<8xf32>
    %252 = vector.multi_reduction <add>, %251, %cst_249 [1] : vector<8x16xf32> to vector<8xf32>
    %253 = vector.shape_cast %252 : vector<8xf32> to vector<8x1xf32>
    %c0_250 = arith.constant 0 : index
    %c0_251 = arith.constant 0 : index
    %c0_252 = arith.constant 0 : index
    %254 = vector.load %arg7[%c0_250, %c0_251, %c0_252] : memref<1x8x1xf32, #tpu.memory_space<vmem>>, vector<1x8x1xf32>
    %255 = vector.shape_cast %254 : vector<1x8x1xf32> to vector<8x1xf32>
    %256 = vector.shape_cast %253 : vector<8x1xf32> to vector<1x8x1xf32>
    tpu.vector_store %arg7[%c0_250, %c0_251, %c0_252], %256 {strides = array<i32>} : memref<1x8x1xf32, #tpu.memory_space<vmem>>, vector<1x8x1xf32>,
    return
  }
  func.func @transform_0(%arg0: i32) -> (i32, i32) {
    %c0_i32 = arith.constant 0 : i32
    %c0_i32_0 = arith.constant 0 : i32
    %c0_i32_1 = arith.constant 0 : i32
    return %c0_i32, %c0_i32_0 : i32, i32
  }
  func.func @transform_1(%arg0: i32) -> (i32, i32, i32, i32) {
    %c0_i32 = arith.constant 0 : i32
    %c0_i32_0 = arith.constant 0 : i32
    %c0_i32_1 = arith.constant 0 : i32
    %c0_i32_2 = arith.constant 0 : i32
    return %arg0, %c0_i32, %c0_i32_0, %c0_i32_1 : i32, i32, i32, i32
  }
  func.func @transform_2(%arg0: i32) -> (i32, i32) {
    %c0_i32 = arith.constant 0 : i32
    %c0_i32_0 = arith.constant 0 : i32
    %c0_i32_1 = arith.constant 0 : i32
    return %c0_i32, %c0_i32_0 : i32, i32
  }
  func.func @transform_3(%arg0: i32) -> (i32, i32) {
    %c0_i32 = arith.constant 0 : i32
    %c0_i32_0 = arith.constant 0 : i32
    %c0_i32_1 = arith.constant 0 : i32
    return %c0_i32, %c0_i32_0 : i32, i32
  }
  func.func @transform_4(%arg0: i32) -> (i32, i32, i32, i32) {
    %c0_i32 = arith.constant 0 : i32
    %c0_i32_0 = arith.constant 0 : i32
    %c0_i32_1 = arith.constant 0 : i32
    %c0_i32_2 = arith.constant 0 : i32
    return %arg0, %c0_i32, %c0_i32_0, %c0_i32_1 : i32, i32, i32, i32
  }
  func.func @transform_5(%arg0: i32) -> (i32, i32, i32) {
    %c0_i32 = arith.constant 0 : i32
    %c0_i32_0 = arith.constant 0 : i32
    %c0_i32_1 = arith.constant 0 : i32
    return %arg0, %c0_i32, %c0_i32_0 : i32, i32, i32
  }
  func.func @transform_6(%arg0: i32) -> (i32, i32, i32) {
    %c0_i32 = arith.constant 0 : i32
    %c0_i32_0 = arith.constant 0 : i32
    %c0_i32_1 = arith.constant 0 : i32
    return %arg0, %c0_i32, %c0_i32_0 : i32, i32, i32
  }
}

</mosaic_0001>

<llo_original>
// kernel: tpu_custom_call.1
$region0: #{tpu_custom_call.1}
  #allocation0 [shape = 'u32[]', space=smem, size = 0x4, offset = 0x4, fixed_abs, tag = 'smem constant byte address 0x4 - core index']
  #allocation1 [shape = 'u32[144,128]{1,0:T(1,128)}', space=vmem, size = 0x12000, scoped, tag = 'internal scratch']
  %s0 = inlined_call_operand.vmem [shape: f32[8,4], index: 0, kind: input, shape index: {}]
  %s1 = inlined_call_operand.hbm [shape: f32[2,4,8,8], index: 1, kind: input, shape index: {}]
  %s2 = inlined_call_operand.vmem [shape: f32[16,8], index: 2, kind: input, shape index: {}]
  %s3 = inlined_call_operand.vmem [shape: f32[8,16], index: 3, kind: input, shape index: {}]
  %s4 = inlined_call_operand.hbm [shape: f32[2,8,16,16], index: 4, kind: output, shape index: {0}]
  %s5 = inlined_call_operand.vmem [shape: f32[2,8,1], index: 5, kind: output, shape index: {1}]
  %s6 = inlined_call_operand.vmem [shape: f32[2,8,1], index: 6, kind: output, shape index: {2}]
  %7 = xla_tuple %s4, %s5, %s6
  %s8 = sld [smem:[#allocation0]]
  $region73: #{tpu_custom_call.1} parent=0
    _
  %s10 = ssub.s32 1, %s8
  %s11 = scalar_select 0, %s10, %s8
  $region1: #{tpu_custom_call.1} parent=0
    #allocation2 [shape = 'u8[4096]{0}', space=smem, size = 0x1000, scoped, tag = 'input window, operand 0, single buffered']
    #allocation3 [shape = 's32[2]{0}', space=sflag, size = 0x8, scoped, tag = 'scoped memory for tpu_custom_call.1']
    #allocation4 [shape = 's32[2]{0}', space=sflag, size = 0x8, scoped, tag = 'scoped memory for tpu_custom_call.1']
    #allocation5 [shape = 's32[2]{0}', space=sflag, size = 0x8, scoped, tag = 'scoped memory for tpu_custom_call.1']
    #allocation6 [shape = 'u8[32768]{0}', space=vmem, size = 0x8000, scoped, tag = 'input window, operand 1']
    #allocation7 [shape = 'u8[131072]{0}', space=vmem, size = 0x20000, scoped, tag = 'output window, operand 0']
    %12 = vsyncpa [#allocation5], 0
    %13 = vsyncpa [#allocation3], 0
    %s14 = scalar_lea.sflag [#allocation3], 1
    %15 = vsyncpa %s14, 0
    %16 = vsyncpa [#allocation4], 0
    %s17 = scalar_lea.sflag [#allocation4], 1
    %18 = vsyncpa %s17, 0
    loop: start=0, step=1, limit=4
    $region2: #{tpu_custom_call.1} parent=1 // loop_pre_header
      _
    $region3: #{tpu_custom_call.1} parent=1 // loop_header
      %s20 = sphi 0, %s24
      %p21 = scmp.ge.s32.totalorder %s20, 4
      %s28 = sphi 0, %s28
      %s30 = sphi 0, %s28
      %s31 = sphi 0, %s30
      %s45 = sphi 0, %s31
      %s51 = sphi 0, %s53
      %s54 = sphi 0, %s51
      %s55 = sphi 0, %s54
      %s71 = sphi 0, %s55
      %s75 = sphi 0, %s75
      %s77 = sphi 0, %s75
      %s78 = sphi 0, %s77
      %s92 = sphi 0, %s78
      %s96 = sphi 0, %s96
      %s98 = sphi 0, %s96
      %s99 = sphi 0, %s98
      %s113 = sphi 0, %s99
      %s119 = sphi 0, %s121
      %s122 = sphi 0, %s119
      %s123 = sphi 0, %s122
      %s139 = sphi 0, %s123
      %s145 = sphi 0, %s147
      %s148 = sphi 0, %s145
      %s149 = sphi 0, %s148
      %s165 = sphi 0, %s149
      %s171 = sphi 0, %s173
      %s174 = sphi 0, %s171
      %s175 = sphi 0, %s174
      %s191 = sphi 0, %s175
    $region4: #{tpu_custom_call.1} parent=1 // loop_header_branch
      %23 = sbr.rel (%p21) target = $region8
    $region5: #{tpu_custom_call.1} parent=1 // loop_body
      %s25 = ssub.s32 %s20, 1
      %s26 = ssub.s32 %s20, 2
      %s27 = sadd.s32 %s20, 1
      %s29 = sadd.s32 %s28, 1
      %p32 = scmp.eq.s32.totalorder %s20, 1
      %p33 = scmp.ne.s32.totalorder %s28, %s30
      %p34 = scmp.eq.s32.totalorder %s20, 0
      %p35 = por %p33, %p34
      %p36 = scmp.ne.s32.totalorder %s28, %s30
      %p37 = scmp.eq.s32.totalorder %s25, 1
      %p38 = por %p36, %p37
      %p39 = scmp.ne.s32.totalorder %s30, %s31
      %p40 = scmp.eq.s32.totalorder %s25, 0
      %p41 = por %p39, %p40
      %p42 = scmp.ne.s32.totalorder %s30, %s31
      %p43 = scmp.eq.s32.totalorder %s26, 1
      %p44 = por %p42, %p43
      %p46 = scmp.ne.s32.totalorder %s31, %s45
      %p47 = scmp.eq.s32.totalorder %s26, 0
      %p48 = por %p46, %p47
      %s49 = ssub.s32 %s20, %s27
      %p50 = scmp.eq.s32.totalorder %s49, 0
      %s52 = sadd.s32 %s51, 1
      %s53 = scalar_select %p50, %s51, %s52
      %p56 = pneg %p50
      %p57 = scmp.eq.s32.totalorder %s20, 1
      %p58 = por %p56, %p57
      %p59 = scmp.ne.s32.totalorder %s51, %s54
      %p60 = scmp.eq.s32.totalorder %s20, 0
      %p61 = por %p59, %p60
      %p62 = scmp.ne.s32.totalorder %s51, %s54
      %p63 = scmp.eq.s32.totalorder %s25, 1
      %p64 = por %p62, %p63
      %p65 = scmp.ne.s32.totalorder %s54, %s55
      %p66 = scmp.eq.s32.totalorder %s25, 0
      %p67 = por %p65, %p66
      %p68 = scmp.ne.s32.totalorder %s54, %s55
      %p69 = scmp.eq.s32.totalorder %s26, 1
      %p70 = por %p68, %p69
      %p72 = scmp.ne.s32.totalorder %s55, %s71
      %p73 = scmp.eq.s32.totalorder %s26, 0
      %p74 = por %p72, %p73
      %s76 = sadd.s32 %s75, 1
      %p79 = scmp.eq.s32.totalorder %s20, 1
      %p80 = scmp.ne.s32.totalorder %s75, %s77
      %p81 = scmp.eq.s32.totalorder %s20, 0
      %p82 = por %p80, %p81
      %p83 = scmp.ne.s32.totalorder %s75, %s77
      %p84 = scmp.eq.s32.totalorder %s25, 1
      %p85 = por %p83, %p84
      %p86 = scmp.ne.s32.totalorder %s77, %s78
      %p87 = scmp.eq.s32.totalorder %s25, 0
      %p88 = por %p86, %p87
      %p89 = scmp.ne.s32.totalorder %s77, %s78
      %p90 = scmp.eq.s32.totalorder %s26, 1
      %p91 = por %p89, %p90
      %p93 = scmp.ne.s32.totalorder %s78, %s92
      %p94 = scmp.eq.s32.totalorder %s26, 0
      %p95 = por %p93, %p94
      %s97 = sadd.s32 %s96, 1
      %p100 = scmp.eq.s32.totalorder %s20, 1
      %p101 = scmp.ne.s32.totalorder %s96, %s98
      %p102 = scmp.eq.s32.totalorder %s20, 0
      %p103 = por %p101, %p102
      %p104 = scmp.ne.s32.totalorder %s96, %s98
      %p105 = scmp.eq.s32.totalorder %s25, 1
      %p106 = por %p104, %p105
      %p107 = scmp.ne.s32.totalorder %s98, %s99
      %p108 = scmp.eq.s32.totalorder %s25, 0
      %p109 = por %p107, %p108
      %p110 = scmp.ne.s32.totalorder %s98, %s99
      %p111 = scmp.eq.s32.totalorder %s26, 1
      %p112 = por %p110, %p111
      %p114 = scmp.ne.s32.totalorder %s99, %s113
      %p115 = scmp.eq.s32.totalorder %s26, 0
      %p116 = por %p114, %p115
      %s117 = ssub.s32 %s20, %s27
      %p118 = scmp.eq.s32.totalorder %s117, 0
      %s120 = sadd.s32 %s119, 1
      %s121 = scalar_select %p118, %s119, %s120
      %p124 = pneg %p118
      %p125 = scmp.eq.s32.totalorder %s20, 1
      %p126 = por %p124, %p125
      %p127 = scmp.ne.s32.totalorder %s119, %s122
      %p128 = scmp.eq.s32.totalorder %s20, 0
      %p129 = por %p127, %p128
      %p130 = scmp.ne.s32.totalorder %s119, %s122
      %p131 = scmp.eq.s32.totalorder %s25, 1
      %p132 = por %p130, %p131
      %p133 = scmp.ne.s32.totalorder %s122, %s123
      %p134 = scmp.eq.s32.totalorder %s25, 0
      %p135 = por %p133, %p134
      %p136 = scmp.ne.s32.totalorder %s122, %s123
      %p137 = scmp.eq.s32.totalorder %s26, 1
      %p138 = por %p136, %p137
      %p140 = scmp.ne.s32.totalorder %s123, %s139
      %p141 = scmp.eq.s32.totalorder %s26, 0
      %p142 = por %p140, %p141
      %s143 = ssub.s32 %s20, %s27
      %p144 = scmp.eq.s32.totalorder %s143, 0
      %s146 = sadd.s32 %s145, 1
      %s147 = scalar_select %p144, %s145, %s146
      %p150 = pneg %p144
      %p151 = scmp.eq.s32.totalorder %s20, 1
      %p152 = por %p150, %p151
      %p153 = scmp.ne.s32.totalorder %s145, %s148
      %p154 = scmp.eq.s32.totalorder %s20, 0
      %p155 = por %p153, %p154
      %p156 = scmp.ne.s32.totalorder %s145, %s148
      %p157 = scmp.eq.s32.totalorder %s25, 1
      %p158 = por %p156, %p157
      %p159 = scmp.ne.s32.totalorder %s148, %s149
      %p160 = scmp.eq.s32.totalorder %s25, 0
      %p161 = por %p159, %p160
      %p162 = scmp.ne.s32.totalorder %s148, %s149
      %p163 = scmp.eq.s32.totalorder %s26, 1
      %p164 = por %p162, %p163
      %p166 = scmp.ne.s32.totalorder %s149, %s165
      %p167 = scmp.eq.s32.totalorder %s26, 0
      %p168 = por %p166, %p167
      %s169 = ssub.s32 %s20, %s27
      %p170 = scmp.eq.s32.totalorder %s169, 0
      %s172 = sadd.s32 %s171, 1
      %s173 = scalar_select %p170, %s171, %s172
      %p176 = pneg %p170
      %p177 = scmp.eq.s32.totalorder %s20, 1
      %p178 = por %p176, %p177
      %p179 = scmp.ne.s32.totalorder %s171, %s174
      %p180 = scmp.eq.s32.totalorder %s20, 0
      %p181 = por %p179, %p180
      %p182 = scmp.ne.s32.totalorder %s171, %s174
      %p183 = scmp.eq.s32.totalorder %s25, 1
      %p184 = por %p182, %p183
      %p185 = scmp.ne.s32.totalorder %s174, %s175
      %p186 = scmp.eq.s32.totalorder %s25, 0
      %p187 = por %p185, %p186
      %p188 = scmp.ne.s32.totalorder %s174, %s175
      %p189 = scmp.eq.s32.totalorder %s26, 1
      %p190 = por %p188, %p189
      %p192 = scmp.ne.s32.totalorder %s175, %s191
      %p193 = scmp.eq.s32.totalorder %s26, 0
      %p194 = por %p192, %p193
      %p195 = scmp.le.s32.totalorder 1, %s20
      %p196 = scmp.lt.s32.totalorder %s20, 3
      %p197 = pnand %p195, %p196
      %p198 = pneg %p197
      // Predicated region
      $region9: #{tpu_custom_call.1} parent=5 // pred_check
        _
      $region10: #{tpu_custom_call.1} parent=5 // pred_check_branch
        %200 = sbr.rel (%p197) target = $region12
      $region11: #{tpu_custom_call.1} parent=5 // pred_region
        %s201 = ssub.s32 %s20, 1
        // Predicated region
        $region13: #{tpu_custom_call.1} parent=11 // pred_check
          %p202 = pneg %p41
        $region14: #{tpu_custom_call.1} parent=11 // pred_check_branch
          %204 = sbr.rel (%p202) target = $region16
        $region15: #{tpu_custom_call.1} parent=11 // pred_region
          %s206 = ssub.s32 128, 128
          %207 = vsyncadd [#allocation5], %s206
          %s209 = sshll.u32 %s0, 4
          %s210 = int_to_ptr.vmem [resolvable:$true] %s209
          %212 = dma.vmem_to_smem %s210, 128, [#allocation2], [#allocation5]
        $region16: #{tpu_custom_call.1} parent=11 // pred_fallthru
          _
        // Predicated region
        $region17: #{tpu_custom_call.1} parent=11 // pred_check
          %p213 = pneg %p88
        $region18: #{tpu_custom_call.1} parent=11 // pred_check_branch
          %215 = sbr.rel (%p213) target = $region20
        $region19: #{tpu_custom_call.1} parent=11 // pred_region
          _
        $region20: #{tpu_custom_call.1} parent=11 // pred_fallthru
          _
        // Predicated region
        $region21: #{tpu_custom_call.1} parent=11 // pred_check
          %p216 = pneg %p109
        $region22: #{tpu_custom_call.1} parent=11 // pred_check_branch
          %218 = sbr.rel (%p216) target = $region24
        $region23: #{tpu_custom_call.1} parent=11 // pred_region
          _
        $region24: #{tpu_custom_call.1} parent=11 // pred_fallthru
          _
      $region12: #{tpu_custom_call.1} parent=5 // pred_fallthru
        _
      %p219 = scmp.lt.s32.totalorder %s20, 2
      // Predicated region
      $region25: #{tpu_custom_call.1} parent=5 // pred_check
        %p220 = pneg %p219
      $region26: #{tpu_custom_call.1} parent=5 // pred_check_branch
        %222 = sbr.rel (%p220) target = $region28
      $region27: #{tpu_custom_call.1} parent=5 // pred_region
        // Predicated region
        $region29: #{tpu_custom_call.1} parent=27 // pred_check
          %p223 = pneg %p61
        $region30: #{tpu_custom_call.1} parent=27 // pred_check_branch
          %225 = sbr.rel (%p223) target = $region32
        $region31: #{tpu_custom_call.1} parent=27 // pred_region
          %s226 = sand.u32 %s51, 1
          %s227 = scalar_lea.sflag [#allocation3], %s226
          %s228 = sand.u32 %s51, 1
          %s229 = smul.addr %s228, 32
          %s230 = scalar_lea.vmem [#allocation6], %s229
          %s232 = ssub.s32 512, 512
          %233 = vsyncadd %s227, %s232
          %s234 = smul.addr %s20, 4
          %s235 = smul.addr %s234, 128
          %s236 = scalar_lea.hbm %s1, %s235
          %s237 = sshll.u32 %s230, 4
          %s238 = int_to_ptr.vmem [resolvable:$true] %s237
          %243 = dma.hbm_to_vmem [thread:$0]  %s236, 512, %s238, %s227, 128, 128, 8
        $region32: #{tpu_custom_call.1} parent=27 // pred_fallthru
          _
      $region28: #{tpu_custom_call.1} parent=5 // pred_fallthru
        _
      %p244 = scmp.le.s32.totalorder 1, %s20
      %p245 = scmp.lt.s32.totalorder %s20, 3
      %p246 = pnand %p244, %p245
      %p247 = pneg %p246
      // Predicated region
      $region33: #{tpu_custom_call.1} parent=5 // pred_check
        _
      $region34: #{tpu_custom_call.1} parent=5 // pred_check_branch
        %249 = sbr.rel (%p246) target = $region36
      $region35: #{tpu_custom_call.1} parent=5 // pred_region
        %s250 = ssub.s32 %s20, 1
        // Predicated region
        $region37: #{tpu_custom_call.1} parent=35 // pred_check
          %p251 = pneg %p41
        $region38: #{tpu_custom_call.1} parent=35 // pred_check_branch
          %253 = sbr.rel (%p251) target = $region40
        $region39: #{tpu_custom_call.1} parent=35 // pred_region
          %254 = dma.done [#allocation5], 128
        $region40: #{tpu_custom_call.1} parent=35 // pred_fallthru
          _
        %s255 = sand.u32 %s54, 1
        %s256 = scalar_lea.sflag [#allocation3], %s255
        %s257 = sand.u32 %s54, 1
        %s258 = smul.addr %s257, 32
        %s259 = scalar_lea.vmem [#allocation6], %s258
        // Predicated region
        $region41: #{tpu_custom_call.1} parent=35 // pred_check
          %p260 = pneg %p67
        $region42: #{tpu_custom_call.1} parent=35 // pred_check_branch
          %262 = sbr.rel (%p260) target = $region44
        $region43: #{tpu_custom_call.1} parent=35 // pred_region
          %263 = dma.done %s256, 512
        $region44: #{tpu_custom_call.1} parent=35 // pred_fallthru
          _
        %264 = sfence
        %p265 = pneg %p41
        %p266 = pneg %p38
        %s267 = sand.u32 %s54, 1
        %s268 = scalar_lea.sflag [#allocation3], %s267
        %s269 = sand.u32 %s54, 1
        %s270 = smul.addr %s269, 32
        %s271 = scalar_lea.vmem [#allocation6], %s270
        %p272 = pneg %p67
        %p273 = pneg %p64
        %p274 = pneg %p88
        %p275 = pneg %p85
        %p276 = pneg %p109
        %p277 = pneg %p106
        %p278 = pneg %p135
        %p279 = pneg %p132
        %s280 = sand.u32 %s122, 1
        %s281 = scalar_lea.sflag [#allocation4], %s280
        %s282 = sand.u32 %s122, 1
        %s283 = smul.addr %s282, 128
        %s284 = scalar_lea.vmem [#allocation7], %s283
        %p285 = pneg %p161
        %p286 = pneg %p158
        %p287 = scmp.lt.s32.totalorder %s25, 1
        %s288 = scalar_select %p287, %s25, 1
        %s289 = smul.addr %s288, 8
        %s290 = scalar_lea.vmem %s5, %s289
        %p291 = pneg %p187
        %p292 = pneg %p184
        %p293 = scmp.lt.s32.totalorder %s25, 1
        %s294 = scalar_select %p293, %s25, 1
        %s295 = smul.addr %s294, 8
        %s296 = scalar_lea.vmem %s6, %s295
        %p297 = scmp.lt.s32.totalorder %s25, 1
        %s298 = scalar_select %p297, %s25, 1
        %s299 = smul.addr %s298, 8
        %s300 = scalar_lea.vmem %s5, %s299
        %p301 = scmp.lt.s32.totalorder %s25, 1
        %s302 = scalar_select %p301, %s25, 1
        %s303 = smul.addr %s302, 8
        %s304 = scalar_lea.vmem %s6, %s303
        %s305 = sld [smem:[#allocation2]]
        %v306 = vld [vmem:[%s259] sm:$0xff]
        %v307 = vstv %s305
        %v308 = vmul.f32 %v307, %v306
        %s309 = sld [smem:[#allocation2 + $0x1]]
        %s310 = scalar_lea.vmem %s259, 8 [#allocation6]
        %v311 = vld [vmem:[%s310] sm:$0xff]
        %v312 = vstv %s309
        %v313 = vmul.f32 %v312, %v311
        %v314 = vadd.f32 %v308, %v313
        %s315 = sld [smem:[#allocation2 + $0x2]]
        %s316 = scalar_lea.vmem %s259, 16 [#allocation6]
        %v317 = vld [vmem:[%s316] sm:$0xff]
        %v318 = vstv %s315
        %v319 = vmul.f32 %v318, %v317
        %v320 = vadd.f32 %v314, %v319
        %s321 = sld [smem:[#allocation2 + $0x3]]
        %s322 = scalar_lea.vmem %s259, 24 [#allocation6]
        %v323 = vld [vmem:[%s322] sm:$0xff]
        %v324 = vstv %s321
        %v325 = vmul.f32 %v324, %v323
        %v326 = vadd.f32 %v320, %v325
        %v327 = vld [vmem:[%s3] sm:$0xff]
        %vm328 = vcmask 64512
        %v330 = vsel %vm328, %v326, 0
        %332 = vmatprep.subr.mxu0 0.0
        %333 = vmatpush1.msra.mxu0 0.0
        %334 = vmatprep.subr.mxu0 0.0
        %335 = vmatpush1.msra.mxu0 0.0
        %336 = vmatprep.subr.mxu0 0.0
        %337 = vmatpush1.msra.mxu0 0.0
        %338 = vmatprep.subr.mxu0 0.0
        %339 = vmatpush1.msra.mxu0 0.0
        %340 = vmatprep.subr.mxu0 0.0
        %341 = vmatpush1.msra.mxu0 0.0
        %342 = vmatprep.subr.mxu0 0.0
        %343 = vmatpush1.msra.mxu0 0.0
        %344 = vmatprep.subr.mxu0 0.0
        %345 = vmatpush1.msra.mxu0 0.0
        %346 = vmatprep.subr.mxu0 0.0
        %347 = vmatpush1.msra.mxu0 0.0
        %348 = vmatprep.subr.mxu0 0.0
        %349 = vmatpush1.msra.mxu0 0.0
        %350 = vmatprep.subr.mxu0 0.0
        %351 = vmatpush1.msra.mxu0 0.0
        %352 = vmatprep.subr.mxu0 0.0
        %353 = vmatpush1.msra.mxu0 0.0
        %354 = vmatprep.subr.mxu0 0.0
        %355 = vmatpush1.msra.mxu0 0.0
        %356 = vmatprep.subr.mxu0 0.0
        %357 = vmatpush1.msra.mxu0 0.0
        %358 = vmatprep.subr.mxu0 0.0
        %359 = vmatpush1.msra.mxu0 0.0
        %360 = vmatprep.subr.mxu0 0.0
        %361 = vmatpush1.msra.mxu0 0.0
        %362 = vmatprep.subr.mxu0 0.0
        %363 = vmatpush1.msra.mxu0 %v327
        %364 = vmatprep.subr.mxu0 0.0
        %365 = vmatpush2.msra.mxu0 0.0
        %366 = vmatprep.subr.mxu0 0.0
        %367 = vmatpush2.msra.mxu0 0.0
        %368 = vmatprep.subr.mxu0 0.0
        %369 = vmatpush2.msra.mxu0 0.0
        %370 = vmatprep.subr.mxu0 0.0
        %371 = vmatpush2.msra.mxu0 0.0
        %372 = vmatprep.subr.mxu0 0.0
        %373 = vmatpush2.msra.mxu0 0.0
        %374 = vmatprep.subr.mxu0 0.0
        %375 = vmatpush2.msra.mxu0 0.0
        %376 = vmatprep.subr.mxu0 0.0
        %377 = vmatpush2.msra.mxu0 0.0
        %378 = vmatprep.subr.mxu0 0.0
        %379 = vmatpush2.msra.mxu0 0.0
        %380 = vmatprep.subr.mxu0 0.0
        %381 = vmatpush2.msra.mxu0 0.0
        %382 = vmatprep.subr.mxu0 0.0
        %383 = vmatpush2.msra.mxu0 0.0
        %384 = vmatprep.subr.mxu0 0.0
        %385 = vmatpush2.msra.mxu0 0.0
        %386 = vmatprep.subr.mxu0 0.0
        %387 = vmatpush2.msra.mxu0 0.0
        %388 = vmatprep.subr.mxu0 0.0
        %389 = vmatpush2.msra.mxu0 0.0
        %390 = vmatprep.subr.mxu0 0.0
        %391 = vmatpush2.msra.mxu0 0.0
        %392 = vmatprep.subr.mxu0 0.0
        %393 = vmatpush2.msra.mxu0 0.0
        %394 = vmatprep.subr.mxu0 0.0
        %395 = vmatpush2.msra.mxu0 0.0
        %396 = vmatprep.mubr.f32.mxu0 0.0
        %397 = vmatmul.mubr.f32.gmra.mxu0 %v330
        %v398 = vpop.f32.mrf.mxu0
        %v399 = vadd.f32 0.0, %v398
        %v400 = vpop.f32.mrf.mxu0
        %401 = vdwg.mxu0
        %v402 = vld [vmem:[%s2] sm:$0xff]
        %v403 = vld [vmem:[%s2 + $0x8] sm:$0xff]
        %v405 = vsel %vm328, %v402, 0
        %v408 = vsel %vm328, %v403, 0
        %410 = vmatprep.subr.mxu0 0.0
        %411 = vmatpush1.msra.mxu0 0.0
        %412 = vmatprep.subr.mxu0 0.0
        %413 = vmatpush1.msra.mxu0 0.0
        %414 = vmatprep.subr.mxu0 0.0
        %415 = vmatpush1.msra.mxu0 0.0
        %416 = vmatprep.subr.mxu0 0.0
        %417 = vmatpush1.msra.mxu0 0.0
        %418 = vmatprep.subr.mxu0 0.0
        %419 = vmatpush1.msra.mxu0 0.0
        %420 = vmatprep.subr.mxu0 0.0
        %421 = vmatpush1.msra.mxu0 0.0
        %422 = vmatprep.subr.mxu0 0.0
        %423 = vmatpush1.msra.mxu0 0.0
        %424 = vmatprep.subr.mxu0 0.0
        %425 = vmatpush1.msra.mxu0 0.0
        %426 = vmatprep.subr.mxu0 0.0
        %427 = vmatpush1.msra.mxu0 0.0
        %428 = vmatprep.subr.mxu0 0.0
        %429 = vmatpush1.msra.mxu0 0.0
        %430 = vmatprep.subr.mxu0 0.0
        %431 = vmatpush1.msra.mxu0 0.0
        %432 = vmatprep.subr.mxu0 0.0
        %433 = vmatpush1.msra.mxu0 0.0
        %434 = vmatprep.subr.mxu0 0.0
        %435 = vmatpush1.msra.mxu0 0.0
        %436 = vmatprep.subr.mxu0 0.0
        %437 = vmatpush1.msra.mxu0 0.0
        %438 = vmatprep.subr.mxu0 0.0
        %439 = vmatpush1.msra.mxu0 0.0
        %440 = vmatprep.subr.mxu0 0.0
        %441 = vmatpush1.msra.mxu0 %v399
        %442 = vmatprep.subr.mxu0 0.0
        %443 = vmatpush2.msra.mxu0 0.0
        %444 = vmatprep.subr.mxu0 0.0
        %445 = vmatpush2.msra.mxu0 0.0
        %446 = vmatprep.subr.mxu0 0.0
        %447 = vmatpush2.msra.mxu0 0.0
        %448 = vmatprep.subr.mxu0 0.0
        %449 = vmatpush2.msra.mxu0 0.0
        %450 = vmatprep.subr.mxu0 0.0
        %451 = vmatpush2.msra.mxu0 0.0
        %452 = vmatprep.subr.mxu0 0.0
        %453 = vmatpush2.msra.mxu0 0.0
        %454 = vmatprep.subr.mxu0 0.0
        %455 = vmatpush2.msra.mxu0 0.0
        %456 = vmatprep.subr.mxu0 0.0
        %457 = vmatpush2.msra.mxu0 0.0
        %458 = vmatprep.subr.mxu0 0.0
        %459 = vmatpush2.msra.mxu0 0.0
        %460 = vmatprep.subr.mxu0 0.0
        %461 = vmatpush2.msra.mxu0 0.0
        %462 = vmatprep.subr.mxu0 0.0
        %463 = vmatpush2.msra.mxu0 0.0
        %464 = vmatprep.subr.mxu0 0.0
        %465 = vmatpush2.msra.mxu0 0.0
        %466 = vmatprep.subr.mxu0 0.0
        %467 = vmatpush2.msra.mxu0 0.0
        %468 = vmatprep.subr.mxu0 0.0
        %469 = vmatpush2.msra.mxu0 0.0
        %470 = vmatprep.subr.mxu0 0.0
        %471 = vmatpush2.msra.mxu0 0.0
        %472 = vmatprep.subr.mxu0 0.0
        %473 = vmatpush2.msra.mxu0 0.0
        %474 = vmatprep.mubr.f32.mxu0 0.0
        %475 = vmatmul.mubr.f32.gmra.mxu0 %v405
        %v476 = vpop.f32.mrf.mxu0
        %v477 = vadd.f32 0.0, %v476
        %v478 = vpop.f32.mrf.mxu0
        %479 = vmatprep.mubr.f32.mxu0 0.0
        %480 = vmatmul.mubr.f32.gmra.mxu0 %v408
        %v481 = vpop.f32.mrf.mxu0
        %v482 = vadd.f32 0.0, %v481
        %v483 = vpop.f32.mrf.mxu0
        %484 = vdwg.mxu0
        %v485 = vmax.f32 %v477, 0.0
        %v486 = vmax.f32 %v482, 0.0
        %s487 = sld [smem:[#allocation2 + $0x80]]
        %v488 = vstv %s487
        %v489 = vmul.f32 %v488, %v306
        %s490 = sld [smem:[#allocation2 + $0x81]]
        %v491 = vstv %s490
        %v492 = vmul.f32 %v491, %v311
        %v493 = vadd.f32 %v489, %v492
        %s494 = sld [smem:[#allocation2 + $0x82]]
        %v495 = vstv %s494
        %v496 = vmul.f32 %v495, %v317
        %v497 = vadd.f32 %v493, %v496
        %s498 = sld [smem:[#allocation2 + $0x83]]
        %v499 = vstv %s498
        %v500 = vmul.f32 %v499, %v323
        %v501 = vadd.f32 %v497, %v500
        %v503 = vsel %vm328, %v501, 0
        %505 = vmatprep.subr.mxu0 0.0
        %506 = vmatpush1.msra.mxu0 0.0
        %507 = vmatprep.subr.mxu0 0.0
        %508 = vmatpush1.msra.mxu0 0.0
        %509 = vmatprep.subr.mxu0 0.0
        %510 = vmatpush1.msra.mxu0 0.0
        %511 = vmatprep.subr.mxu0 0.0
        %512 = vmatpush1.msra.mxu0 0.0
        %513 = vmatprep.subr.mxu0 0.0
        %514 = vmatpush1.msra.mxu0 0.0
        %515 = vmatprep.subr.mxu0 0.0
        %516 = vmatpush1.msra.mxu0 0.0
        %517 = vmatprep.subr.mxu0 0.0
        %518 = vmatpush1.msra.mxu0 0.0
        %519 = vmatprep.subr.mxu0 0.0
        %520 = vmatpush1.msra.mxu0 0.0
        %521 = vmatprep.subr.mxu0 0.0
        %522 = vmatpush1.msra.mxu0 0.0
        %523 = vmatprep.subr.mxu0 0.0
        %524 = vmatpush1.msra.mxu0 0.0
        %525 = vmatprep.subr.mxu0 0.0
        %526 = vmatpush1.msra.mxu0 0.0
        %527 = vmatprep.subr.mxu0 0.0
        %528 = vmatpush1.msra.mxu0 0.0
        %529 = vmatprep.subr.mxu0 0.0
        %530 = vmatpush1.msra.mxu0 0.0
        %531 = vmatprep.subr.mxu0 0.0
        %532 = vmatpush1.msra.mxu0 0.0
        %533 = vmatprep.subr.mxu0 0.0
        %534 = vmatpush1.msra.mxu0 0.0
        %535 = vmatprep.subr.mxu0 0.0
        %536 = vmatpush1.msra.mxu0 %v327
        %537 = vmatprep.subr.mxu0 0.0
        %538 = vmatpush2.msra.mxu0 0.0
        %539 = vmatprep.subr.mxu0 0.0
        %540 = vmatpush2.msra.mxu0 0.0
        %541 = vmatprep.subr.mxu0 0.0
        %542 = vmatpush2.msra.mxu0 0.0
        %543 = vmatprep.subr.mxu0 0.0
        %544 = vmatpush2.msra.mxu0 0.0
        %545 = vmatprep.subr.mxu0 0.0
        %546 = vmatpush2.msra.mxu0 0.0
        %547 = vmatprep.subr.mxu0 0.0
        %548 = vmatpush2.msra.mxu0 0.0
        %549 = vmatprep.subr.mxu0 0.0
        %550 = vmatpush2.msra.mxu0 0.0
        %551 = vmatprep.subr.mxu0 0.0
        %552 = vmatpush2.msra.mxu0 0.0
        %553 = vmatprep.subr.mxu0 0.0
        %554 = vmatpush2.msra.mxu0 0.0
        %555 = vmatprep.subr.mxu0 0.0
        %556 = vmatpush2.msra.mxu0 0.0
        %557 = vmatprep.subr.mxu0 0.0
        %558 = vmatpush2.msra.mxu0 0.0
        %559 = vmatprep.subr.mxu0 0.0
        %560 = vmatpush2.msra.mxu0 0.0
        %561 = vmatprep.subr.mxu0 0.0
        %562 = vmatpush2.msra.mxu0 0.0
        %563 = vmatprep.subr.mxu0 0.0
        %564 = vmatpush2.msra.mxu0 0.0
        %565 = vmatprep.subr.mxu0 0.0
        %566 = vmatpush2.msra.mxu0 0.0
        %567 = vmatprep.subr.mxu0 0.0
        %568 = vmatpush2.msra.mxu0 0.0
        %569 = vmatprep.mubr.f32.mxu0 0.0
        %570 = vmatmul.mubr.f32.gmra.mxu0 %v503
        %v571 = vpop.f32.mrf.mxu0
        %v572 = vadd.f32 0.0, %v571
        %v573 = vpop.f32.mrf.mxu0
        %574 = vdwg.mxu0
        %575 = vmatprep.subr.mxu0 0.0
        %576 = vmatpush1.msra.mxu0 0.0
        %577 = vmatprep.subr.mxu0 0.0
        %578 = vmatpush1.msra.mxu0 0.0
        %579 = vmatprep.subr.mxu0 0.0
        %580 = vmatpush1.msra.mxu0 0.0
        %581 = vmatprep.subr.mxu0 0.0
        %582 = vmatpush1.msra.mxu0 0.0
        %583 = vmatprep.subr.mxu0 0.0
        %584 = vmatpush1.msra.mxu0 0.0
        %585 = vmatprep.subr.mxu0 0.0
        %586 = vmatpush1.msra.mxu0 0.0
        %587 = vmatprep.subr.mxu0 0.0
        %588 = vmatpush1.msra.mxu0 0.0
        %589 = vmatprep.subr.mxu0 0.0
        %590 = vmatpush1.msra.mxu0 0.0
        %591 = vmatprep.subr.mxu0 0.0
        %592 = vmatpush1.msra.mxu0 0.0
        %593 = vmatprep.subr.mxu0 0.0
        %594 = vmatpush1.msra.mxu0 0.0
        %595 = vmatprep.subr.mxu0 0.0
        %596 = vmatpush1.msra.mxu0 0.0
        %597 = vmatprep.subr.mxu0 0.0
        %598 = vmatpush1.msra.mxu0 0.0
        %599 = vmatprep.subr.mxu0 0.0
        %600 = vmatpush1.msra.mxu0 0.0
        %601 = vmatprep.subr.mxu0 0.0
        %602 = vmatpush1.msra.mxu0 0.0
        %603 = vmatprep.subr.mxu0 0.0
        %604 = vmatpush1.msra.mxu0 0.0
        %605 = vmatprep.subr.mxu0 0.0
        %606 = vmatpush1.msra.mxu0 %v572
        %607 = vmatprep.subr.mxu0 0.0
        %608 = vmatpush2.msra.mxu0 0.0
        %609 = vmatprep.subr.mxu0 0.0
        %610 = vmatpush2.msra.mxu0 0.0
        %611 = vmatprep.subr.mxu0 0.0
        %612 = vmatpush2.msra.mxu0 0.0
        %613 = vmatprep.subr.mxu0 0.0
        %614 = vmatpush2.msra.mxu0 0.0
        %615 = vmatprep.subr.mxu0 0.0
        %616 = vmatpush2.msra.mxu0 0.0
        %617 = vmatprep.subr.mxu0 0.0
        %618 = vmatpush2.msra.mxu0 0.0
        %619 = vmatprep.subr.mxu0 0.0
        %620 = vmatpush2.msra.mxu0 0.0
        %621 = vmatprep.subr.mxu0 0.0
        %622 = vmatpush2.msra.mxu0 0.0
        %623 = vmatprep.subr.mxu0 0.0
        %624 = vmatpush2.msra.mxu0 0.0
        %625 = vmatprep.subr.mxu0 0.0
        %626 = vmatpush2.msra.mxu0 0.0
        %627 = vmatprep.subr.mxu0 0.0
        %628 = vmatpush2.msra.mxu0 0.0
        %629 = vmatprep.subr.mxu0 0.0
        %630 = vmatpush2.msra.mxu0 0.0
        %631 = vmatprep.subr.mxu0 0.0
        %632 = vmatpush2.msra.mxu0 0.0
        %633 = vmatprep.subr.mxu0 0.0
        %634 = vmatpush2.msra.mxu0 0.0
        %635 = vmatprep.subr.mxu0 0.0
        %636 = vmatpush2.msra.mxu0 0.0
        %637 = vmatprep.subr.mxu0 0.0
        %638 = vmatpush2.msra.mxu0 0.0
        %639 = vmatprep.mubr.f32.mxu0 0.0
        %640 = vmatmul.mubr.f32.gmra.mxu0 %v405
        %v641 = vpop.f32.mrf.mxu0
        %v642 = vadd.f32 0.0, %v641
        %v643 = vpop.f32.mrf.mxu0
        %644 = vmatprep.mubr.f32.mxu0 0.0
        %645 = vmatmul.mubr.f32.gmra.mxu0 %v408
        %v646 = vpop.f32.mrf.mxu0
        %v647 = vadd.f32 0.0, %v646
        %v648 = vpop.f32.mrf.mxu0
        %649 = vdwg.mxu0
        %v650 = vmax.f32 %v642, 0.0
        %v651 = vmax.f32 %v647, 0.0
        %s652 = sld [smem:[#allocation2 + $0x100]]
        %v653 = vstv %s652
        %v654 = vmul.f32 %v653, %v306
        %s655 = sld [smem:[#allocation2 + $0x101]]
        %v656 = vstv %s655
        %v657 = vmul.f32 %v656, %v311
        %v658 = vadd.f32 %v654, %v657
        %s659 = sld [smem:[#allocation2 + $0x102]]
        %v660 = vstv %s659
        %v661 = vmul.f32 %v660, %v317
        %v662 = vadd.f32 %v658, %v661
        %s663 = sld [smem:[#allocation2 + $0x103]]
        %v664 = vstv %s663
        %v665 = vmul.f32 %v664, %v323
        %v666 = vadd.f32 %v662, %v665
        %v668 = vsel %vm328, %v666, 0
        %670 = vmatprep.subr.mxu0 0.0
        %671 = vmatpush1.msra.mxu0 0.0
        %672 = vmatprep.subr.mxu0 0.0
        %673 = vmatpush1.msra.mxu0 0.0
        %674 = vmatprep.subr.mxu0 0.0
        %675 = vmatpush1.msra.mxu0 0.0
        %676 = vmatprep.subr.mxu0 0.0
        %677 = vmatpush1.msra.mxu0 0.0
        %678 = vmatprep.subr.mxu0 0.0
        %679 = vmatpush1.msra.mxu0 0.0
        %680 = vmatprep.subr.mxu0 0.0
        %681 = vmatpush1.msra.mxu0 0.0
        %682 = vmatprep.subr.mxu0 0.0
        %683 = vmatpush1.msra.mxu0 0.0
        %684 = vmatprep.subr.mxu0 0.0
        %685 = vmatpush1.msra.mxu0 0.0
        %686 = vmatprep.subr.mxu0 0.0
        %687 = vmatpush1.msra.mxu0 0.0
        %688 = vmatprep.subr.mxu0 0.0
        %689 = vmatpush1.msra.mxu0 0.0
        %690 = vmatprep.subr.mxu0 0.0
        %691 = vmatpush1.msra.mxu0 0.0
        %692 = vmatprep.subr.mxu0 0.0
        %693 = vmatpush1.msra.mxu0 0.0
        %694 = vmatprep.subr.mxu0 0.0
        %695 = vmatpush1.msra.mxu0 0.0
        %696 = vmatprep.subr.mxu0 0.0
        %697 = vmatpush1.msra.mxu0 0.0
        %698 = vmatprep.subr.mxu0 0.0
        %699 = vmatpush1.msra.mxu0 0.0
        %700 = vmatprep.subr.mxu0 0.0
        %701 = vmatpush1.msra.mxu0 %v327
        %702 = vmatprep.subr.mxu0 0.0
        %703 = vmatpush2.msra.mxu0 0.0
        %704 = vmatprep.subr.mxu0 0.0
        %705 = vmatpush2.msra.mxu0 0.0
        %706 = vmatprep.subr.mxu0 0.0
        %707 = vmatpush2.msra.mxu0 0.0
        %708 = vmatprep.subr.mxu0 0.0
        %709 = vmatpush2.msra.mxu0 0.0
        %710 = vmatprep.subr.mxu0 0.0
        %711 = vmatpush2.msra.mxu0 0.0
        %712 = vmatprep.subr.mxu0 0.0
        %713 = vmatpush2.msra.mxu0 0.0
        %714 = vmatprep.subr.mxu0 0.0
        %715 = vmatpush2.msra.mxu0 0.0
        %716 = vmatprep.subr.mxu0 0.0
        %717 = vmatpush2.msra.mxu0 0.0
        %718 = vmatprep.subr.mxu0 0.0
        %719 = vmatpush2.msra.mxu0 0.0
        %720 = vmatprep.subr.mxu0 0.0
        %721 = vmatpush2.msra.mxu0 0.0
        %722 = vmatprep.subr.mxu0 0.0
        %723 = vmatpush2.msra.mxu0 0.0
        %724 = vmatprep.subr.mxu0 0.0
        %725 = vmatpush2.msra.mxu0 0.0
        %726 = vmatprep.subr.mxu0 0.0
        %727 = vmatpush2.msra.mxu0 0.0
        %728 = vmatprep.subr.mxu0 0.0
        %729 = vmatpush2.msra.mxu0 0.0
        %730 = vmatprep.subr.mxu0 0.0
        %731 = vmatpush2.msra.mxu0 0.0
        %732 = vmatprep.subr.mxu0 0.0
        %733 = vmatpush2.msra.mxu0 0.0
        %734 = vmatprep.mubr.f32.mxu0 0.0
        %735 = vmatmul.mubr.f32.gmra.mxu0 %v668
        %v736 = vpop.f32.mrf.mxu0
        %v737 = vadd.f32 0.0, %v736
        %v738 = vpop.f32.mrf.mxu0
        %739 = vdwg.mxu0
        %740 = vmatprep.subr.mxu0 0.0
        %741 = vmatpush1.msra.mxu0 0.0
        %742 = vmatprep.subr.mxu0 0.0
        %743 = vmatpush1.msra.mxu0 0.0
        %744 = vmatprep.subr.mxu0 0.0
        %745 = vmatpush1.msra.mxu0 0.0
        %746 = vmatprep.subr.mxu0 0.0
        %747 = vmatpush1.msra.mxu0 0.0
        %748 = vmatprep.subr.mxu0 0.0
        %749 = vmatpush1.msra.mxu0 0.0
        %750 = vmatprep.subr.mxu0 0.0
        %751 = vmatpush1.msra.mxu0 0.0
        %752 = vmatprep.subr.mxu0 0.0
        %753 = vmatpush1.msra.mxu0 0.0
        %754 = vmatprep.subr.mxu0 0.0
        %755 = vmatpush1.msra.mxu0 0.0
        %756 = vmatprep.subr.mxu0 0.0
        %757 = vmatpush1.msra.mxu0 0.0
        %758 = vmatprep.subr.mxu0 0.0
        %759 = vmatpush1.msra.mxu0 0.0
        %760 = vmatprep.subr.mxu0 0.0
        %761 = vmatpush1.msra.mxu0 0.0
        %762 = vmatprep.subr.mxu0 0.0
        %763 = vmatpush1.msra.mxu0 0.0
        %764 = vmatprep.subr.mxu0 0.0
        %765 = vmatpush1.msra.mxu0 0.0
        %766 = vmatprep.subr.mxu0 0.0
        %767 = vmatpush1.msra.mxu0 0.0
        %768 = vmatprep.subr.mxu0 0.0
        %769 = vmatpush1.msra.mxu0 0.0
        %770 = vmatprep.subr.mxu0 0.0
        %771 = vmatpush1.msra.mxu0 %v737
        %772 = vmatprep.subr.mxu0 0.0
        %773 = vmatpush2.msra.mxu0 0.0
        %774 = vmatprep.subr.mxu0 0.0
        %775 = vmatpush2.msra.mxu0 0.0
        %776 = vmatprep.subr.mxu0 0.0
        %777 = vmatpush2.msra.mxu0 0.0
        %778 = vmatprep.subr.mxu0 0.0
        %779 = vmatpush2.msra.mxu0 0.0
        %780 = vmatprep.subr.mxu0 0.0
        %781 = vmatpush2.msra.mxu0 0.0
        %782 = vmatprep.subr.mxu0 0.0
        %783 = vmatpush2.msra.mxu0 0.0
        %784 = vmatprep.subr.mxu0 0.0
        %785 = vmatpush2.msra.mxu0 0.0
        %786 = vmatprep.subr.mxu0 0.0
        %787 = vmatpush2.msra.mxu0 0.0
        %788 = vmatprep.subr.mxu0 0.0
        %789 = vmatpush2.msra.mxu0 0.0
        %790 = vmatprep.subr.mxu0 0.0
        %791 = vmatpush2.msra.mxu0 0.0
        %792 = vmatprep.subr.mxu0 0.0
        %793 = vmatpush2.msra.mxu0 0.0
        %794 = vmatprep.subr.mxu0 0.0
        %795 = vmatpush2.msra.mxu0 0.0
        %796 = vmatprep.subr.mxu0 0.0
        %797 = vmatpush2.msra.mxu0 0.0
        %798 = vmatprep.subr.mxu0 0.0
        %799 = vmatpush2.msra.mxu0 0.0
        %800 = vmatprep.subr.mxu0 0.0
        %801 = vmatpush2.msra.mxu0 0.0
        %802 = vmatprep.subr.mxu0 0.0
        %803 = vmatpush2.msra.mxu0 0.0
        %804 = vmatprep.mubr.f32.mxu0 0.0
        %805 = vmatmul.mubr.f32.gmra.mxu0 %v405
        %v806 = vpop.f32.mrf.mxu0
        %v807 = vadd.f32 0.0, %v806
        %v808 = vpop.f32.mrf.mxu0
        %809 = vmatprep.mubr.f32.mxu0 0.0
        %810 = vmatmul.mubr.f32.gmra.mxu0 %v408
        %v811 = vpop.f32.mrf.mxu0
        %v812 = vadd.f32 0.0, %v811
        %v813 = vpop.f32.mrf.mxu0
        %814 = vdwg.mxu0
        %v815 = vmax.f32 %v807, 0.0
        %v816 = vmax.f32 %v812, 0.0
        %s817 = sld [smem:[#allocation2 + $0x180]]
        %v818 = vstv %s817
        %v819 = vmul.f32 %v818, %v306
        %s820 = sld [smem:[#allocation2 + $0x181]]
        %v821 = vstv %s820
        %v822 = vmul.f32 %v821, %v311
        %v823 = vadd.f32 %v819, %v822
        %s824 = sld [smem:[#allocation2 + $0x182]]
        %v825 = vstv %s824
        %v826 = vmul.f32 %v825, %v317
        %v827 = vadd.f32 %v823, %v826
        %s828 = sld [smem:[#allocation2 + $0x183]]
        %v829 = vstv %s828
        %v830 = vmul.f32 %v829, %v323
        %v831 = vadd.f32 %v827, %v830
        %v833 = vsel %vm328, %v831, 0
        %835 = vmatprep.subr.mxu0 0.0
        %836 = vmatpush1.msra.mxu0 0.0
        %837 = vmatprep.subr.mxu0 0.0
        %838 = vmatpush1.msra.mxu0 0.0
        %839 = vmatprep.subr.mxu0 0.0
        %840 = vmatpush1.msra.mxu0 0.0
        %841 = vmatprep.subr.mxu0 0.0
        %842 = vmatpush1.msra.mxu0 0.0
        %843 = vmatprep.subr.mxu0 0.0
        %844 = vmatpush1.msra.mxu0 0.0
        %845 = vmatprep.subr.mxu0 0.0
        %846 = vmatpush1.msra.mxu0 0.0
        %847 = vmatprep.subr.mxu0 0.0
        %848 = vmatpush1.msra.mxu0 0.0
        %849 = vmatprep.subr.mxu0 0.0
        %850 = vmatpush1.msra.mxu0 0.0
        %851 = vmatprep.subr.mxu0 0.0
        %852 = vmatpush1.msra.mxu0 0.0
        %853 = vmatprep.subr.mxu0 0.0
        %854 = vmatpush1.msra.mxu0 0.0
        %855 = vmatprep.subr.mxu0 0.0
        %856 = vmatpush1.msra.mxu0 0.0
        %857 = vmatprep.subr.mxu0 0.0
        %858 = vmatpush1.msra.mxu0 0.0
        %859 = vmatprep.subr.mxu0 0.0
        %860 = vmatpush1.msra.mxu0 0.0
        %861 = vmatprep.subr.mxu0 0.0
        %862 = vmatpush1.msra.mxu0 0.0
        %863 = vmatprep.subr.mxu0 0.0
        %864 = vmatpush1.msra.mxu0 0.0
        %865 = vmatprep.subr.mxu0 0.0
        %866 = vmatpush1.msra.mxu0 %v327
        %867 = vmatprep.subr.mxu0 0.0
        %868 = vmatpush2.msra.mxu0 0.0
        %869 = vmatprep.subr.mxu0 0.0
        %870 = vmatpush2.msra.mxu0 0.0
        %871 = vmatprep.subr.mxu0 0.0
        %872 = vmatpush2.msra.mxu0 0.0
        %873 = vmatprep.subr.mxu0 0.0
        %874 = vmatpush2.msra.mxu0 0.0
        %875 = vmatprep.subr.mxu0 0.0
        %876 = vmatpush2.msra.mxu0 0.0
        %877 = vmatprep.subr.mxu0 0.0
        %878 = vmatpush2.msra.mxu0 0.0
        %879 = vmatprep.subr.mxu0 0.0
        %880 = vmatpush2.msra.mxu0 0.0
        %881 = vmatprep.subr.mxu0 0.0
        %882 = vmatpush2.msra.mxu0 0.0
        %883 = vmatprep.subr.mxu0 0.0
        %884 = vmatpush2.msra.mxu0 0.0
        %885 = vmatprep.subr.mxu0 0.0
        %886 = vmatpush2.msra.mxu0 0.0
        %887 = vmatprep.subr.mxu0 0.0
        %888 = vmatpush2.msra.mxu0 0.0
        %889 = vmatprep.subr.mxu0 0.0
        %890 = vmatpush2.msra.mxu0 0.0
        %891 = vmatprep.subr.mxu0 0.0
        %892 = vmatpush2.msra.mxu0 0.0
        %893 = vmatprep.subr.mxu0 0.0
        %894 = vmatpush2.msra.mxu0 0.0
        %895 = vmatprep.subr.mxu0 0.0
        %896 = vmatpush2.msra.mxu0 0.0
        %897 = vmatprep.subr.mxu0 0.0
        %898 = vmatpush2.msra.mxu0 0.0
        %899 = vmatprep.mubr.f32.mxu0 0.0
        %900 = vmatmul.mubr.f32.gmra.mxu0 %v833
        %v901 = vpop.f32.mrf.mxu0
        %v902 = vadd.f32 0.0, %v901
        %v903 = vpop.f32.mrf.mxu0
        %904 = vdwg.mxu0
        %905 = vmatprep.subr.mxu0 0.0
        %906 = vmatpush1.msra.mxu0 0.0
        %907 = vmatprep.subr.mxu0 0.0
        %908 = vmatpush1.msra.mxu0 0.0
        %909 = vmatprep.subr.mxu0 0.0
        %910 = vmatpush1.msra.mxu0 0.0
        %911 = vmatprep.subr.mxu0 0.0
        %912 = vmatpush1.msra.mxu0 0.0
        %913 = vmatprep.subr.mxu0 0.0
        %914 = vmatpush1.msra.mxu0 0.0
        %915 = vmatprep.subr.mxu0 0.0
        %916 = vmatpush1.msra.mxu0 0.0
        %917 = vmatprep.subr.mxu0 0.0
        %918 = vmatpush1.msra.mxu0 0.0
        %919 = vmatprep.subr.mxu0 0.0
        %920 = vmatpush1.msra.mxu0 0.0
        %921 = vmatprep.subr.mxu0 0.0
        %922 = vmatpush1.msra.mxu0 0.0
        %923 = vmatprep.subr.mxu0 0.0
        %924 = vmatpush1.msra.mxu0 0.0
        %925 = vmatprep.subr.mxu0 0.0
        %926 = vmatpush1.msra.mxu0 0.0
        %927 = vmatprep.subr.mxu0 0.0
        %928 = vmatpush1.msra.mxu0 0.0
        %929 = vmatprep.subr.mxu0 0.0
        %930 = vmatpush1.msra.mxu0 0.0
        %931 = vmatprep.subr.mxu0 0.0
        %932 = vmatpush1.msra.mxu0 0.0
        %933 = vmatprep.subr.mxu0 0.0
        %934 = vmatpush1.msra.mxu0 0.0
        %935 = vmatprep.subr.mxu0 0.0
        %936 = vmatpush1.msra.mxu0 %v902
        %937 = vmatprep.subr.mxu0 0.0
        %938 = vmatpush2.msra.mxu0 0.0
        %939 = vmatprep.subr.mxu0 0.0
        %940 = vmatpush2.msra.mxu0 0.0
        %941 = vmatprep.subr.mxu0 0.0
        %942 = vmatpush2.msra.mxu0 0.0
        %943 = vmatprep.subr.mxu0 0.0
        %944 = vmatpush2.msra.mxu0 0.0
        %945 = vmatprep.subr.mxu0 0.0
        %946 = vmatpush2.msra.mxu0 0.0
        %947 = vmatprep.subr.mxu0 0.0
        %948 = vmatpush2.msra.mxu0 0.0
        %949 = vmatprep.subr.mxu0 0.0
        %950 = vmatpush2.msra.mxu0 0.0
        %951 = vmatprep.subr.mxu0 0.0
        %952 = vmatpush2.msra.mxu0 0.0
        %953 = vmatprep.subr.mxu0 0.0
        %954 = vmatpush2.msra.mxu0 0.0
        %955 = vmatprep.subr.mxu0 0.0
        %956 = vmatpush2.msra.mxu0 0.0
        %957 = vmatprep.subr.mxu0 0.0
        %958 = vmatpush2.msra.mxu0 0.0
        %959 = vmatprep.subr.mxu0 0.0
        %960 = vmatpush2.msra.mxu0 0.0
        %961 = vmatprep.subr.mxu0 0.0
        %962 = vmatpush2.msra.mxu0 0.0
        %963 = vmatprep.subr.mxu0 0.0
        %964 = vmatpush2.msra.mxu0 0.0
        %965 = vmatprep.subr.mxu0 0.0
        %966 = vmatpush2.msra.mxu0 0.0
        %967 = vmatprep.subr.mxu0 0.0
        %968 = vmatpush2.msra.mxu0 0.0
        %969 = vmatprep.mubr.f32.mxu0 0.0
        %970 = vmatmul.mubr.f32.gmra.mxu0 %v405
        %v971 = vpop.f32.mrf.mxu0
        %v972 = vadd.f32 0.0, %v971
        %v973 = vpop.f32.mrf.mxu0
        %974 = vmatprep.mubr.f32.mxu0 0.0
        %975 = vmatmul.mubr.f32.gmra.mxu0 %v408
        %v976 = vpop.f32.mrf.mxu0
        %v977 = vadd.f32 0.0, %v976
        %v978 = vpop.f32.mrf.mxu0
        %979 = vdwg.mxu0
        %v980 = vmax.f32 %v972, 0.0
        %v981 = vmax.f32 %v977, 0.0
        %s982 = sld [smem:[#allocation2 + $0x200]]
        %v983 = vstv %s982
        %v984 = vmul.f32 %v983, %v306
        %s985 = sld [smem:[#allocation2 + $0x201]]
        %v986 = vstv %s985
        %v987 = vmul.f32 %v986, %v311
        %v988 = vadd.f32 %v984, %v987
        %s989 = sld [smem:[#allocation2 + $0x202]]
        %v990 = vstv %s989
        %v991 = vmul.f32 %v990, %v317
        %v992 = vadd.f32 %v988, %v991
        %s993 = sld [smem:[#allocation2 + $0x203]]
        %v994 = vstv %s993
        %v995 = vmul.f32 %v994, %v323
        %v996 = vadd.f32 %v992, %v995
        %v998 = vsel %vm328, %v996, 0
        %1000 = vmatprep.subr.mxu0 0.0
        %1001 = vmatpush1.msra.mxu0 0.0
        %1002 = vmatprep.subr.mxu0 0.0
        %1003 = vmatpush1.msra.mxu0 0.0
        %1004 = vmatprep.subr.mxu0 0.0
        %1005 = vmatpush1.msra.mxu0 0.0
        %1006 = vmatprep.subr.mxu0 0.0
        %1007 = vmatpush1.msra.mxu0 0.0
        %1008 = vmatprep.subr.mxu0 0.0
        %1009 = vmatpush1.msra.mxu0 0.0
        %1010 = vmatprep.subr.mxu0 0.0
        %1011 = vmatpush1.msra.mxu0 0.0
        %1012 = vmatprep.subr.mxu0 0.0
        %1013 = vmatpush1.msra.mxu0 0.0
        %1014 = vmatprep.subr.mxu0 0.0
        %1015 = vmatpush1.msra.mxu0 0.0
        %1016 = vmatprep.subr.mxu0 0.0
        %1017 = vmatpush1.msra.mxu0 0.0
        %1018 = vmatprep.subr.mxu0 0.0
        %1019 = vmatpush1.msra.mxu0 0.0
        %1020 = vmatprep.subr.mxu0 0.0
        %1021 = vmatpush1.msra.mxu0 0.0
        %1022 = vmatprep.subr.mxu0 0.0
        %1023 = vmatpush1.msra.mxu0 0.0
        %1024 = vmatprep.subr.mxu0 0.0
        %1025 = vmatpush1.msra.mxu0 0.0
        %1026 = vmatprep.subr.mxu0 0.0
        %1027 = vmatpush1.msra.mxu0 0.0
        %1028 = vmatprep.subr.mxu0 0.0
        %1029 = vmatpush1.msra.mxu0 0.0
        %1030 = vmatprep.subr.mxu0 0.0
        %1031 = vmatpush1.msra.mxu0 %v327
        %1032 = vmatprep.subr.mxu0 0.0
        %1033 = vmatpush2.msra.mxu0 0.0
        %1034 = vmatprep.subr.mxu0 0.0
        %1035 = vmatpush2.msra.mxu0 0.0
        %1036 = vmatprep.subr.mxu0 0.0
        %1037 = vmatpush2.msra.mxu0 0.0
        %1038 = vmatprep.subr.mxu0 0.0
        %1039 = vmatpush2.msra.mxu0 0.0
        %1040 = vmatprep.subr.mxu0 0.0
        %1041 = vmatpush2.msra.mxu0 0.0
        %1042 = vmatprep.subr.mxu0 0.0
        %1043 = vmatpush2.msra.mxu0 0.0
        %1044 = vmatprep.subr.mxu0 0.0
        %1045 = vmatpush2.msra.mxu0 0.0
        %1046 = vmatprep.subr.mxu0 0.0
        %1047 = vmatpush2.msra.mxu0 0.0
        %1048 = vmatprep.subr.mxu0 0.0
        %1049 = vmatpush2.msra.mxu0 0.0
        %1050 = vmatprep.subr.mxu0 0.0
        %1051 = vmatpush2.msra.mxu0 0.0
        %1052 = vmatprep.subr.mxu0 0.0
        %1053 = vmatpush2.msra.mxu0 0.0
        %1054 = vmatprep.subr.mxu0 0.0
        %1055 = vmatpush2.msra.mxu0 0.0
        %1056 = vmatprep.subr.mxu0 0.0
        %1057 = vmatpush2.msra.mxu0 0.0
        %1058 = vmatprep.subr.mxu0 0.0
        %1059 = vmatpush2.msra.mxu0 0.0
        %1060 = vmatprep.subr.mxu0 0.0
        %1061 = vmatpush2.msra.mxu0 0.0
        %1062 = vmatprep.subr.mxu0 0.0
        %1063 = vmatpush2.msra.mxu0 0.0
        %1064 = vmatprep.mubr.f32.mxu0 0.0
        %1065 = vmatmul.mubr.f32.gmra.mxu0 %v998
        %v1066 = vpop.f32.mrf.mxu0
        %v1067 = vadd.f32 0.0, %v1066
        %v1068 = vpop.f32.mrf.mxu0
        %1069 = vdwg.mxu0
        %1070 = vmatprep.subr.mxu0 0.0
        %1071 = vmatpush1.msra.mxu0 0.0
        %1072 = vmatprep.subr.mxu0 0.0
        %1073 = vmatpush1.msra.mxu0 0.0
        %1074 = vmatprep.subr.mxu0 0.0
        %1075 = vmatpush1.msra.mxu0 0.0
        %1076 = vmatprep.subr.mxu0 0.0
        %1077 = vmatpush1.msra.mxu0 0.0
        %1078 = vmatprep.subr.mxu0 0.0
        %1079 = vmatpush1.msra.mxu0 0.0
        %1080 = vmatprep.subr.mxu0 0.0
        %1081 = vmatpush1.msra.mxu0 0.0
        %1082 = vmatprep.subr.mxu0 0.0
        %1083 = vmatpush1.msra.mxu0 0.0
        %1084 = vmatprep.subr.mxu0 0.0
        %1085 = vmatpush1.msra.mxu0 0.0
        %1086 = vmatprep.subr.mxu0 0.0
        %1087 = vmatpush1.msra.mxu0 0.0
        %1088 = vmatprep.subr.mxu0 0.0
        %1089 = vmatpush1.msra.mxu0 0.0
        %1090 = vmatprep.subr.mxu0 0.0
        %1091 = vmatpush1.msra.mxu0 0.0
        %1092 = vmatprep.subr.mxu0 0.0
        %1093 = vmatpush1.msra.mxu0 0.0
        %1094 = vmatprep.subr.mxu0 0.0
        %1095 = vmatpush1.msra.mxu0 0.0
        %1096 = vmatprep.subr.mxu0 0.0
        %1097 = vmatpush1.msra.mxu0 0.0
        %1098 = vmatprep.subr.mxu0 0.0
        %1099 = vmatpush1.msra.mxu0 0.0
        %1100 = vmatprep.subr.mxu0 0.0
        %1101 = vmatpush1.msra.mxu0 %v1067
        %1102 = vmatprep.subr.mxu0 0.0
        %1103 = vmatpush2.msra.mxu0 0.0
        %1104 = vmatprep.subr.mxu0 0.0
        %1105 = vmatpush2.msra.mxu0 0.0
        %1106 = vmatprep.subr.mxu0 0.0
        %1107 = vmatpush2.msra.mxu0 0.0
        %1108 = vmatprep.subr.mxu0 0.0
        %1109 = vmatpush2.msra.mxu0 0.0
        %1110 = vmatprep.subr.mxu0 0.0
        %1111 = vmatpush2.msra.mxu0 0.0
        %1112 = vmatprep.subr.mxu0 0.0
        %1113 = vmatpush2.msra.mxu0 0.0
        %1114 = vmatprep.subr.mxu0 0.0
        %1115 = vmatpush2.msra.mxu0 0.0
        %1116 = vmatprep.subr.mxu0 0.0
        %1117 = vmatpush2.msra.mxu0 0.0
        %1118 = vmatprep.subr.mxu0 0.0
        %1119 = vmatpush2.msra.mxu0 0.0
        %1120 = vmatprep.subr.mxu0 0.0
        %1121 = vmatpush2.msra.mxu0 0.0
        %1122 = vmatprep.subr.mxu0 0.0
        %1123 = vmatpush2.msra.mxu0 0.0
        %1124 = vmatprep.subr.mxu0 0.0
        %1125 = vmatpush2.msra.mxu0 0.0
        %1126 = vmatprep.subr.mxu0 0.0
        %1127 = vmatpush2.msra.mxu0 0.0
        %1128 = vmatprep.subr.mxu0 0.0
        %1129 = vmatpush2.msra.mxu0 0.0
        %1130 = vmatprep.subr.mxu0 0.0
        %1131 = vmatpush2.msra.mxu0 0.0
        %1132 = vmatprep.subr.mxu0 0.0
        %1133 = vmatpush2.msra.mxu0 0.0
        %1134 = vmatprep.mubr.f32.mxu0 0.0
        %1135 = vmatmul.mubr.f32.gmra.mxu0 %v405
        %v1136 = vpop.f32.mrf.mxu0
        %v1137 = vadd.f32 0.0, %v1136
        %v1138 = vpop.f32.mrf.mxu0
        %1139 = vmatprep.mubr.f32.mxu0 0.0
        %1140 = vmatmul.mubr.f32.gmra.mxu0 %v408
        %v1141 = vpop.f32.mrf.mxu0
        %v1142 = vadd.f32 0.0, %v1141
        %v1143 = vpop.f32.mrf.mxu0
        %1144 = vdwg.mxu0
        %v1145 = vmax.f32 %v1137, 0.0
        %v1146 = vmax.f32 %v1142, 0.0
        %s1147 = sld [smem:[#allocation2 + $0x280]]
        %v1148 = vstv %s1147
        %v1149 = vmul.f32 %v1148, %v306
        %s1150 = sld [smem:[#allocation2 + $0x281]]
        %v1151 = vstv %s1150
        %v1152 = vmul.f32 %v1151, %v311
        %v1153 = vadd.f32 %v1149, %v1152
        %s1154 = sld [smem:[#allocation2 + $0x282]]
        %v1155 = vstv %s1154
        %v1156 = vmul.f32 %v1155, %v317
        %v1157 = vadd.f32 %v1153, %v1156
        %s1158 = sld [smem:[#allocation2 + $0x283]]
        %v1159 = vstv %s1158
        %v1160 = vmul.f32 %v1159, %v323
        %v1161 = vadd.f32 %v1157, %v1160
        %v1163 = vsel %vm328, %v1161, 0
        %1165 = vmatprep.subr.mxu0 0.0
        %1166 = vmatpush1.msra.mxu0 0.0
        %1167 = vmatprep.subr.mxu0 0.0
        %1168 = vmatpush1.msra.mxu0 0.0
        %1169 = vmatprep.subr.mxu0 0.0
        %1170 = vmatpush1.msra.mxu0 0.0
        %1171 = vmatprep.subr.mxu0 0.0
        %1172 = vmatpush1.msra.mxu0 0.0
        %1173 = vmatprep.subr.mxu0 0.0
        %1174 = vmatpush1.msra.mxu0 0.0
        %1175 = vmatprep.subr.mxu0 0.0
        %1176 = vmatpush1.msra.mxu0 0.0
        %1177 = vmatprep.subr.mxu0 0.0
        %1178 = vmatpush1.msra.mxu0 0.0
        %1179 = vmatprep.subr.mxu0 0.0
        %1180 = vmatpush1.msra.mxu0 0.0
        %1181 = vmatprep.subr.mxu0 0.0
        %1182 = vmatpush1.msra.mxu0 0.0
        %1183 = vmatprep.subr.mxu0 0.0
        %1184 = vmatpush1.msra.mxu0 0.0
        %1185 = vmatprep.subr.mxu0 0.0
        %1186 = vmatpush1.msra.mxu0 0.0
        %1187 = vmatprep.subr.mxu0 0.0
        %1188 = vmatpush1.msra.mxu0 0.0
        %1189 = vmatprep.subr.mxu0 0.0
        %1190 = vmatpush1.msra.mxu0 0.0
        %1191 = vmatprep.subr.mxu0 0.0
        %1192 = vmatpush1.msra.mxu0 0.0
        %1193 = vmatprep.subr.mxu0 0.0
        %1194 = vmatpush1.msra.mxu0 0.0
        %1195 = vmatprep.subr.mxu0 0.0
        %1196 = vmatpush1.msra.mxu0 %v327
        %1197 = vmatprep.subr.mxu0 0.0
        %1198 = vmatpush2.msra.mxu0 0.0
        %1199 = vmatprep.subr.mxu0 0.0
        %1200 = vmatpush2.msra.mxu0 0.0
        %1201 = vmatprep.subr.mxu0 0.0
        %1202 = vmatpush2.msra.mxu0 0.0
        %1203 = vmatprep.subr.mxu0 0.0
        %1204 = vmatpush2.msra.mxu0 0.0
        %1205 = vmatprep.subr.mxu0 0.0
        %1206 = vmatpush2.msra.mxu0 0.0
        %1207 = vmatprep.subr.mxu0 0.0
        %1208 = vmatpush2.msra.mxu0 0.0
        %1209 = vmatprep.subr.mxu0 0.0
        %1210 = vmatpush2.msra.mxu0 0.0
        %1211 = vmatprep.subr.mxu0 0.0
        %1212 = vmatpush2.msra.mxu0 0.0
        %1213 = vmatprep.subr.mxu0 0.0
        %1214 = vmatpush2.msra.mxu0 0.0
        %1215 = vmatprep.subr.mxu0 0.0
        %1216 = vmatpush2.msra.mxu0 0.0
        %1217 = vmatprep.subr.mxu0 0.0
        %1218 = vmatpush2.msra.mxu0 0.0
        %1219 = vmatprep.subr.mxu0 0.0
        %1220 = vmatpush2.msra.mxu0 0.0
        %1221 = vmatprep.subr.mxu0 0.0
        %1222 = vmatpush2.msra.mxu0 0.0
        %1223 = vmatprep.subr.mxu0 0.0
        %1224 = vmatpush2.msra.mxu0 0.0
        %1225 = vmatprep.subr.mxu0 0.0
        %1226 = vmatpush2.msra.mxu0 0.0
        %1227 = vmatprep.subr.mxu0 0.0
        %1228 = vmatpush2.msra.mxu0 0.0
        %1229 = vmatprep.mubr.f32.mxu0 0.0
        %1230 = vmatmul.mubr.f32.gmra.mxu0 %v1163
        %v1231 = vpop.f32.mrf.mxu0
        %v1232 = vadd.f32 0.0, %v1231
        %v1233 = vpop.f32.mrf.mxu0
        %1234 = vdwg.mxu0
        %1235 = vmatprep.subr.mxu0 0.0
        %1236 = vmatpush1.msra.mxu0 0.0
        %1237 = vmatprep.subr.mxu0 0.0
        %1238 = vmatpush1.msra.mxu0 0.0
        %1239 = vmatprep.subr.mxu0 0.0
        %1240 = vmatpush1.msra.mxu0 0.0
        %1241 = vmatprep.subr.mxu0 0.0
        %1242 = vmatpush1.msra.mxu0 0.0
        %1243 = vmatprep.subr.mxu0 0.0
        %1244 = vmatpush1.msra.mxu0 0.0
        %1245 = vmatprep.subr.mxu0 0.0
        %1246 = vmatpush1.msra.mxu0 0.0
        %1247 = vmatprep.subr.mxu0 0.0
        %1248 = vmatpush1.msra.mxu0 0.0
        %1249 = vmatprep.subr.mxu0 0.0
        %1250 = vmatpush1.msra.mxu0 0.0
        %1251 = vmatprep.subr.mxu0 0.0
        %1252 = vmatpush1.msra.mxu0 0.0
        %1253 = vmatprep.subr.mxu0 0.0
        %1254 = vmatpush1.msra.mxu0 0.0
        %1255 = vmatprep.subr.mxu0 0.0
        %1256 = vmatpush1.msra.mxu0 0.0
        %1257 = vmatprep.subr.mxu0 0.0
        %1258 = vmatpush1.msra.mxu0 0.0
        %1259 = vmatprep.subr.mxu0 0.0
        %1260 = vmatpush1.msra.mxu0 0.0
        %1261 = vmatprep.subr.mxu0 0.0
        %1262 = vmatpush1.msra.mxu0 0.0
        %1263 = vmatprep.subr.mxu0 0.0
        %1264 = vmatpush1.msra.mxu0 0.0
        %1265 = vmatprep.subr.mxu0 0.0
        %1266 = vmatpush1.msra.mxu0 %v1232
        %1267 = vmatprep.subr.mxu0 0.0
        %1268 = vmatpush2.msra.mxu0 0.0
        %1269 = vmatprep.subr.mxu0 0.0
        %1270 = vmatpush2.msra.mxu0 0.0
        %1271 = vmatprep.subr.mxu0 0.0
        %1272 = vmatpush2.msra.mxu0 0.0
        %1273 = vmatprep.subr.mxu0 0.0
        %1274 = vmatpush2.msra.mxu0 0.0
        %1275 = vmatprep.subr.mxu0 0.0
        %1276 = vmatpush2.msra.mxu0 0.0
        %1277 = vmatprep.subr.mxu0 0.0
        %1278 = vmatpush2.msra.mxu0 0.0
        %1279 = vmatprep.subr.mxu0 0.0
        %1280 = vmatpush2.msra.mxu0 0.0
        %1281 = vmatprep.subr.mxu0 0.0
        %1282 = vmatpush2.msra.mxu0 0.0
        %1283 = vmatprep.subr.mxu0 0.0
        %1284 = vmatpush2.msra.mxu0 0.0
        %1285 = vmatprep.subr.mxu0 0.0
        %1286 = vmatpush2.msra.mxu0 0.0
        %1287 = vmatprep.subr.mxu0 0.0
        %1288 = vmatpush2.msra.mxu0 0.0
        %1289 = vmatprep.subr.mxu0 0.0
        %1290 = vmatpush2.msra.mxu0 0.0
        %1291 = vmatprep.subr.mxu0 0.0
        %1292 = vmatpush2.msra.mxu0 0.0
        %1293 = vmatprep.subr.mxu0 0.0
        %1294 = vmatpush2.msra.mxu0 0.0
        %1295 = vmatprep.subr.mxu0 0.0
        %1296 = vmatpush2.msra.mxu0 0.0
        %1297 = vmatprep.subr.mxu0 0.0
        %1298 = vmatpush2.msra.mxu0 0.0
        %1299 = vmatprep.mubr.f32.mxu0 0.0
        %1300 = vmatmul.mubr.f32.gmra.mxu0 %v405
        %v1301 = vpop.f32.mrf.mxu0
        %v1302 = vadd.f32 0.0, %v1301
        %v1303 = vpop.f32.mrf.mxu0
        %1304 = vmatprep.mubr.f32.mxu0 0.0
        %1305 = vmatmul.mubr.f32.gmra.mxu0 %v408
        %v1306 = vpop.f32.mrf.mxu0
        %v1307 = vadd.f32 0.0, %v1306
        %v1308 = vpop.f32.mrf.mxu0
        %1309 = vdwg.mxu0
        %v1310 = vmax.f32 %v1302, 0.0
        %v1311 = vmax.f32 %v1307, 0.0
        %s1312 = sld [smem:[#allocation2 + $0x300]]
        %v1313 = vstv %s1312
        %v1314 = vmul.f32 %v1313, %v306
        %s1315 = sld [smem:[#allocation2 + $0x301]]
        %v1316 = vstv %s1315
        %v1317 = vmul.f32 %v1316, %v311
        %v1318 = vadd.f32 %v1314, %v1317
        %s1319 = sld [smem:[#allocation2 + $0x302]]
        %v1320 = vstv %s1319
        %v1321 = vmul.f32 %v1320, %v317
        %v1322 = vadd.f32 %v1318, %v1321
        %s1323 = sld [smem:[#allocation2 + $0x303]]
        %v1324 = vstv %s1323
        %v1325 = vmul.f32 %v1324, %v323
        %v1326 = vadd.f32 %v1322, %v1325
        %v1328 = vsel %vm328, %v1326, 0
        %1330 = vmatprep.subr.mxu0 0.0
        %1331 = vmatpush1.msra.mxu0 0.0
        %1332 = vmatprep.subr.mxu0 0.0
        %1333 = vmatpush1.msra.mxu0 0.0
        %1334 = vmatprep.subr.mxu0 0.0
        %1335 = vmatpush1.msra.mxu0 0.0
        %1336 = vmatprep.subr.mxu0 0.0
        %1337 = vmatpush1.msra.mxu0 0.0
        %1338 = vmatprep.subr.mxu0 0.0
        %1339 = vmatpush1.msra.mxu0 0.0
        %1340 = vmatprep.subr.mxu0 0.0
        %1341 = vmatpush1.msra.mxu0 0.0
        %1342 = vmatprep.subr.mxu0 0.0
        %1343 = vmatpush1.msra.mxu0 0.0
        %1344 = vmatprep.subr.mxu0 0.0
        %1345 = vmatpush1.msra.mxu0 0.0
        %1346 = vmatprep.subr.mxu0 0.0
        %1347 = vmatpush1.msra.mxu0 0.0
        %1348 = vmatprep.subr.mxu0 0.0
        %1349 = vmatpush1.msra.mxu0 0.0
        %1350 = vmatprep.subr.mxu0 0.0
        %1351 = vmatpush1.msra.mxu0 0.0
        %1352 = vmatprep.subr.mxu0 0.0
        %1353 = vmatpush1.msra.mxu0 0.0
        %1354 = vmatprep.subr.mxu0 0.0
        %1355 = vmatpush1.msra.mxu0 0.0
        %1356 = vmatprep.subr.mxu0 0.0
        %1357 = vmatpush1.msra.mxu0 0.0
        %1358 = vmatprep.subr.mxu0 0.0
        %1359 = vmatpush1.msra.mxu0 0.0
        %1360 = vmatprep.subr.mxu0 0.0
        %1361 = vmatpush1.msra.mxu0 %v327
        %1362 = vmatprep.subr.mxu0 0.0
        %1363 = vmatpush2.msra.mxu0 0.0
        %1364 = vmatprep.subr.mxu0 0.0
        %1365 = vmatpush2.msra.mxu0 0.0
        %1366 = vmatprep.subr.mxu0 0.0
        %1367 = vmatpush2.msra.mxu0 0.0
        %1368 = vmatprep.subr.mxu0 0.0
        %1369 = vmatpush2.msra.mxu0 0.0
        %1370 = vmatprep.subr.mxu0 0.0
        %1371 = vmatpush2.msra.mxu0 0.0
        %1372 = vmatprep.subr.mxu0 0.0
        %1373 = vmatpush2.msra.mxu0 0.0
        %1374 = vmatprep.subr.mxu0 0.0
        %1375 = vmatpush2.msra.mxu0 0.0
        %1376 = vmatprep.subr.mxu0 0.0
        %1377 = vmatpush2.msra.mxu0 0.0
        %1378 = vmatprep.subr.mxu0 0.0
        %1379 = vmatpush2.msra.mxu0 0.0
        %1380 = vmatprep.subr.mxu0 0.0
        %1381 = vmatpush2.msra.mxu0 0.0
        %1382 = vmatprep.subr.mxu0 0.0
        %1383 = vmatpush2.msra.mxu0 0.0
        %1384 = vmatprep.subr.mxu0 0.0
        %1385 = vmatpush2.msra.mxu0 0.0
        %1386 = vmatprep.subr.mxu0 0.0
        %1387 = vmatpush2.msra.mxu0 0.0
        %1388 = vmatprep.subr.mxu0 0.0
        %1389 = vmatpush2.msra.mxu0 0.0
        %1390 = vmatprep.subr.mxu0 0.0
        %1391 = vmatpush2.msra.mxu0 0.0
        %1392 = vmatprep.subr.mxu0 0.0
        %1393 = vmatpush2.msra.mxu0 0.0
        %1394 = vmatprep.mubr.f32.mxu0 0.0
        %1395 = vmatmul.mubr.f32.gmra.mxu0 %v1328
        %v1396 = vpop.f32.mrf.mxu0
        %v1397 = vadd.f32 0.0, %v1396
        %v1398 = vpop.f32.mrf.mxu0
        %1399 = vdwg.mxu0
        %1400 = vmatprep.subr.mxu0 0.0
        %1401 = vmatpush1.msra.mxu0 0.0
        %1402 = vmatprep.subr.mxu0 0.0
        %1403 = vmatpush1.msra.mxu0 0.0
        %1404 = vmatprep.subr.mxu0 0.0
        %1405 = vmatpush1.msra.mxu0 0.0
        %1406 = vmatprep.subr.mxu0 0.0
        %1407 = vmatpush1.msra.mxu0 0.0
        %1408 = vmatprep.subr.mxu0 0.0
        %1409 = vmatpush1.msra.mxu0 0.0
        %1410 = vmatprep.subr.mxu0 0.0
        %1411 = vmatpush1.msra.mxu0 0.0
        %1412 = vmatprep.subr.mxu0 0.0
        %1413 = vmatpush1.msra.mxu0 0.0
        %1414 = vmatprep.subr.mxu0 0.0
        %1415 = vmatpush1.msra.mxu0 0.0
        %1416 = vmatprep.subr.mxu0 0.0
        %1417 = vmatpush1.msra.mxu0 0.0
        %1418 = vmatprep.subr.mxu0 0.0
        %1419 = vmatpush1.msra.mxu0 0.0
        %1420 = vmatprep.subr.mxu0 0.0
        %1421 = vmatpush1.msra.mxu0 0.0
        %1422 = vmatprep.subr.mxu0 0.0
        %1423 = vmatpush1.msra.mxu0 0.0
        %1424 = vmatprep.subr.mxu0 0.0
        %1425 = vmatpush1.msra.mxu0 0.0
        %1426 = vmatprep.subr.mxu0 0.0
        %1427 = vmatpush1.msra.mxu0 0.0
        %1428 = vmatprep.subr.mxu0 0.0
        %1429 = vmatpush1.msra.mxu0 0.0
        %1430 = vmatprep.subr.mxu0 0.0
        %1431 = vmatpush1.msra.mxu0 %v1397
        %1432 = vmatprep.subr.mxu0 0.0
        %1433 = vmatpush2.msra.mxu0 0.0
        %1434 = vmatprep.subr.mxu0 0.0
        %1435 = vmatpush2.msra.mxu0 0.0
        %1436 = vmatprep.subr.mxu0 0.0
        %1437 = vmatpush2.msra.mxu0 0.0
        %1438 = vmatprep.subr.mxu0 0.0
        %1439 = vmatpush2.msra.mxu0 0.0
        %1440 = vmatprep.subr.mxu0 0.0
        %1441 = vmatpush2.msra.mxu0 0.0
        %1442 = vmatprep.subr.mxu0 0.0
        %1443 = vmatpush2.msra.mxu0 0.0
        %1444 = vmatprep.subr.mxu0 0.0
        %1445 = vmatpush2.msra.mxu0 0.0
        %1446 = vmatprep.subr.mxu0 0.0
        %1447 = vmatpush2.msra.mxu0 0.0
        %1448 = vmatprep.subr.mxu0 0.0
        %1449 = vmatpush2.msra.mxu0 0.0
        %1450 = vmatprep.subr.mxu0 0.0
        %1451 = vmatpush2.msra.mxu0 0.0
        %1452 = vmatprep.subr.mxu0 0.0
        %1453 = vmatpush2.msra.mxu0 0.0
        %1454 = vmatprep.subr.mxu0 0.0
        %1455 = vmatpush2.msra.mxu0 0.0
        %1456 = vmatprep.subr.mxu0 0.0
        %1457 = vmatpush2.msra.mxu0 0.0
        %1458 = vmatprep.subr.mxu0 0.0
        %1459 = vmatpush2.msra.mxu0 0.0
        %1460 = vmatprep.subr.mxu0 0.0
        %1461 = vmatpush2.msra.mxu0 0.0
        %1462 = vmatprep.subr.mxu0 0.0
        %1463 = vmatpush2.msra.mxu0 0.0
        %1464 = vmatprep.mubr.f32.mxu0 0.0
        %1465 = vmatmul.mubr.f32.gmra.mxu0 %v405
        %v1466 = vpop.f32.mrf.mxu0
        %v1467 = vadd.f32 0.0, %v1466
        %v1468 = vpop.f32.mrf.mxu0
        %1469 = vmatprep.mubr.f32.mxu0 0.0
        %1470 = vmatmul.mubr.f32.gmra.mxu0 %v408
        %v1471 = vpop.f32.mrf.mxu0
        %v1472 = vadd.f32 0.0, %v1471
        %v1473 = vpop.f32.mrf.mxu0
        %1474 = vdwg.mxu0
        %v1475 = vmax.f32 %v1467, 0.0
        %v1476 = vmax.f32 %v1472, 0.0
        %s1477 = sld [smem:[#allocation2 + $0x380]]
        %v1478 = vstv %s1477
        %v1479 = vmul.f32 %v1478, %v306
        %s1480 = sld [smem:[#allocation2 + $0x381]]
        %v1481 = vstv %s1480
        %v1482 = vmul.f32 %v1481, %v311
        %v1483 = vadd.f32 %v1479, %v1482
        %s1484 = sld [smem:[#allocation2 + $0x382]]
        %v1485 = vstv %s1484
        %v1486 = vmul.f32 %v1485, %v317
        %v1487 = vadd.f32 %v1483, %v1486
        %s1488 = sld [smem:[#allocation2 + $0x383]]
        %v1489 = vstv %s1488
        %v1490 = vmul.f32 %v1489, %v323
        %v1491 = vadd.f32 %v1487, %v1490
        %v1493 = vsel %vm328, %v1491, 0
        %1495 = vmatprep.subr.mxu0 0.0
        %1496 = vmatpush1.msra.mxu0 0.0
        %1497 = vmatprep.subr.mxu0 0.0
        %1498 = vmatpush1.msra.mxu0 0.0
        %1499 = vmatprep.subr.mxu0 0.0
        %1500 = vmatpush1.msra.mxu0 0.0
        %1501 = vmatprep.subr.mxu0 0.0
        %1502 = vmatpush1.msra.mxu0 0.0
        %1503 = vmatprep.subr.mxu0 0.0
        %1504 = vmatpush1.msra.mxu0 0.0
        %1505 = vmatprep.subr.mxu0 0.0
        %1506 = vmatpush1.msra.mxu0 0.0
        %1507 = vmatprep.subr.mxu0 0.0
        %1508 = vmatpush1.msra.mxu0 0.0
        %1509 = vmatprep.subr.mxu0 0.0
        %1510 = vmatpush1.msra.mxu0 0.0
        %1511 = vmatprep.subr.mxu0 0.0
        %1512 = vmatpush1.msra.mxu0 0.0
        %1513 = vmatprep.subr.mxu0 0.0
        %1514 = vmatpush1.msra.mxu0 0.0
        %1515 = vmatprep.subr.mxu0 0.0
        %1516 = vmatpush1.msra.mxu0 0.0
        %1517 = vmatprep.subr.mxu0 0.0
        %1518 = vmatpush1.msra.mxu0 0.0
        %1519 = vmatprep.subr.mxu0 0.0
        %1520 = vmatpush1.msra.mxu0 0.0
        %1521 = vmatprep.subr.mxu0 0.0
        %1522 = vmatpush1.msra.mxu0 0.0
        %1523 = vmatprep.subr.mxu0 0.0
        %1524 = vmatpush1.msra.mxu0 0.0
        %1525 = vmatprep.subr.mxu0 0.0
        %1526 = vmatpush1.msra.mxu0 %v327
        %1527 = vmatprep.subr.mxu0 0.0
        %1528 = vmatpush2.msra.mxu0 0.0
        %1529 = vmatprep.subr.mxu0 0.0
        %1530 = vmatpush2.msra.mxu0 0.0
        %1531 = vmatprep.subr.mxu0 0.0
        %1532 = vmatpush2.msra.mxu0 0.0
        %1533 = vmatprep.subr.mxu0 0.0
        %1534 = vmatpush2.msra.mxu0 0.0
        %1535 = vmatprep.subr.mxu0 0.0
        %1536 = vmatpush2.msra.mxu0 0.0
        %1537 = vmatprep.subr.mxu0 0.0
        %1538 = vmatpush2.msra.mxu0 0.0
        %1539 = vmatprep.subr.mxu0 0.0
        %1540 = vmatpush2.msra.mxu0 0.0
        %1541 = vmatprep.subr.mxu0 0.0
        %1542 = vmatpush2.msra.mxu0 0.0
        %1543 = vmatprep.subr.mxu0 0.0
        %1544 = vmatpush2.msra.mxu0 0.0
        %1545 = vmatprep.subr.mxu0 0.0
        %1546 = vmatpush2.msra.mxu0 0.0
        %1547 = vmatprep.subr.mxu0 0.0
        %1548 = vmatpush2.msra.mxu0 0.0
        %1549 = vmatprep.subr.mxu0 0.0
        %1550 = vmatpush2.msra.mxu0 0.0
        %1551 = vmatprep.subr.mxu0 0.0
        %1552 = vmatpush2.msra.mxu0 0.0
        %1553 = vmatprep.subr.mxu0 0.0
        %1554 = vmatpush2.msra.mxu0 0.0
        %1555 = vmatprep.subr.mxu0 0.0
        %1556 = vmatpush2.msra.mxu0 0.0
        %1557 = vmatprep.subr.mxu0 0.0
        %1558 = vmatpush2.msra.mxu0 0.0
        %1559 = vmatprep.mubr.f32.mxu0 0.0
        %1560 = vmatmul.mubr.f32.gmra.mxu0 %v1493
        %v1561 = vpop.f32.mrf.mxu0
        %v1562 = vadd.f32 0.0, %v1561
        %v1563 = vpop.f32.mrf.mxu0
        %1564 = vdwg.mxu0
        %1565 = vmatprep.subr.mxu0 0.0
        %1566 = vmatpush1.msra.mxu0 0.0
        %1567 = vmatprep.subr.mxu0 0.0
        %1568 = vmatpush1.msra.mxu0 0.0
        %1569 = vmatprep.subr.mxu0 0.0
        %1570 = vmatpush1.msra.mxu0 0.0
        %1571 = vmatprep.subr.mxu0 0.0
        %1572 = vmatpush1.msra.mxu0 0.0
        %1573 = vmatprep.subr.mxu0 0.0
        %1574 = vmatpush1.msra.mxu0 0.0
        %1575 = vmatprep.subr.mxu0 0.0
        %1576 = vmatpush1.msra.mxu0 0.0
        %1577 = vmatprep.subr.mxu0 0.0
        %1578 = vmatpush1.msra.mxu0 0.0
        %1579 = vmatprep.subr.mxu0 0.0
        %1580 = vmatpush1.msra.mxu0 0.0
        %1581 = vmatprep.subr.mxu0 0.0
        %1582 = vmatpush1.msra.mxu0 0.0
        %1583 = vmatprep.subr.mxu0 0.0
        %1584 = vmatpush1.msra.mxu0 0.0
        %1585 = vmatprep.subr.mxu0 0.0
        %1586 = vmatpush1.msra.mxu0 0.0
        %1587 = vmatprep.subr.mxu0 0.0
        %1588 = vmatpush1.msra.mxu0 0.0
        %1589 = vmatprep.subr.mxu0 0.0
        %1590 = vmatpush1.msra.mxu0 0.0
        %1591 = vmatprep.subr.mxu0 0.0
        %1592 = vmatpush1.msra.mxu0 0.0
        %1593 = vmatprep.subr.mxu0 0.0
        %1594 = vmatpush1.msra.mxu0 0.0
        %1595 = vmatprep.subr.mxu0 0.0
        %1596 = vmatpush1.msra.mxu0 %v1562
        %1597 = vmatprep.subr.mxu0 0.0
        %1598 = vmatpush2.msra.mxu0 0.0
        %1599 = vmatprep.subr.mxu0 0.0
        %1600 = vmatpush2.msra.mxu0 0.0
        %1601 = vmatprep.subr.mxu0 0.0
        %1602 = vmatpush2.msra.mxu0 0.0
        %1603 = vmatprep.subr.mxu0 0.0
        %1604 = vmatpush2.msra.mxu0 0.0
        %1605 = vmatprep.subr.mxu0 0.0
        %1606 = vmatpush2.msra.mxu0 0.0
        %1607 = vmatprep.subr.mxu0 0.0
        %1608 = vmatpush2.msra.mxu0 0.0
        %1609 = vmatprep.subr.mxu0 0.0
        %1610 = vmatpush2.msra.mxu0 0.0
        %1611 = vmatprep.subr.mxu0 0.0
        %1612 = vmatpush2.msra.mxu0 0.0
        %1613 = vmatprep.subr.mxu0 0.0
        %1614 = vmatpush2.msra.mxu0 0.0
        %1615 = vmatprep.subr.mxu0 0.0
        %1616 = vmatpush2.msra.mxu0 0.0
        %1617 = vmatprep.subr.mxu0 0.0
        %1618 = vmatpush2.msra.mxu0 0.0
        %1619 = vmatprep.subr.mxu0 0.0
        %1620 = vmatpush2.msra.mxu0 0.0
        %1621 = vmatprep.subr.mxu0 0.0
        %1622 = vmatpush2.msra.mxu0 0.0
        %1623 = vmatprep.subr.mxu0 0.0
        %1624 = vmatpush2.msra.mxu0 0.0
        %1625 = vmatprep.subr.mxu0 0.0
        %1626 = vmatpush2.msra.mxu0 0.0
        %1627 = vmatprep.subr.mxu0 0.0
        %1628 = vmatpush2.msra.mxu0 0.0
        %1629 = vmatprep.mubr.f32.mxu0 0.0
        %1630 = vmatmul.mubr.f32.gmra.mxu0 %v405
        %v1631 = vpop.f32.mrf.mxu0
        %v1632 = vadd.f32 0.0, %v1631
        %v1633 = vpop.f32.mrf.mxu0
        %1634 = vmatprep.mubr.f32.mxu0 0.0
        %1635 = vmatmul.mubr.f32.gmra.mxu0 %v408
        %v1636 = vpop.f32.mrf.mxu0
        %v1637 = vadd.f32 0.0, %v1636
        %v1638 = vpop.f32.mrf.mxu0
        %1639 = vdwg.mxu0
        %v1640 = vmax.f32 %v1632, 0.0
        %v1641 = vmax.f32 %v1637, 0.0
        %vm1642 = vcmask 130048
        %1643 = vst.msk [vmem:[%s284] sm:$0xff] %vm1642, %v485
        %1644 = vst.msk [vmem:[%s284 + $0x8] sm:$0xff] %vm1642, %v486
        %1645 = vst.msk [vmem:[%s284 + $0x10] sm:$0xff] %vm1642, %v650
        %1646 = vst.msk [vmem:[%s284 + $0x18] sm:$0xff] %vm1642, %v651
        %1647 = vst.msk [vmem:[%s284 + $0x20] sm:$0xff] %vm1642, %v815
        %1648 = vst.msk [vmem:[%s284 + $0x28] sm:$0xff] %vm1642, %v816
        %1649 = vst.msk [vmem:[%s284 + $0x30] sm:$0xff] %vm1642, %v980
        %1650 = vst.msk [vmem:[%s284 + $0x38] sm:$0xff] %vm1642, %v981
        %1651 = vst.msk [vmem:[%s284 + $0x40] sm:$0xff] %vm1642, %v1145
        %1652 = vst.msk [vmem:[%s284 + $0x48] sm:$0xff] %vm1642, %v1146
        %1653 = vst.msk [vmem:[%s284 + $0x50] sm:$0xff] %vm1642, %v1310
        %1654 = vst.msk [vmem:[%s284 + $0x58] sm:$0xff] %vm1642, %v1311
        %1655 = vst.msk [vmem:[%s284 + $0x60] sm:$0xff] %vm1642, %v1475
        %1656 = vst.msk [vmem:[%s284 + $0x68] sm:$0xff] %vm1642, %v1476
        %1657 = vst.msk [vmem:[%s284 + $0x70] sm:$0xff] %vm1642, %v1640
        %1658 = vst.msk [vmem:[%s284 + $0x78] sm:$0xff] %vm1642, %v1641
        %v1659 = vsel %vm1642, %v485, 0.0
        %1660 = vadd.xlane.f32.xlu0 %v1659
        %v1661 = vpop.xlane.xlu0 %1660
        %v1662 = vsel %vm1642, %v486, 0.0
        %1663 = vadd.xlane.f32.xlu0 %v1662
        %v1664 = vpop.xlane.xlu0 %1663
        %v1665 = vsel %vm1642, %v650, 0.0
        %1666 = vadd.xlane.f32.xlu0 %v1665
        %v1667 = vpop.xlane.xlu0 %1666
        %v1668 = vsel %vm1642, %v651, 0.0
        %1669 = vadd.xlane.f32.xlu0 %v1668
        %v1670 = vpop.xlane.xlu0 %1669
        %v1671 = vsel %vm1642, %v815, 0.0
        %1672 = vadd.xlane.f32.xlu0 %v1671
        %v1673 = vpop.xlane.xlu0 %1672
        %v1674 = vsel %vm1642, %v816, 0.0
        %1675 = vadd.xlane.f32.xlu0 %v1674
        %v1676 = vpop.xlane.xlu0 %1675
        %v1677 = vsel %vm1642, %v980, 0.0
        %1678 = vadd.xlane.f32.xlu0 %v1677
        %v1679 = vpop.xlane.xlu0 %1678
        %v1680 = vsel %vm1642, %v981, 0.0
        %1681 = vadd.xlane.f32.xlu0 %v1680
        %v1682 = vpop.xlane.xlu0 %1681
        %v1683 = vsel %vm1642, %v1145, 0.0
        %1684 = vadd.xlane.f32.xlu0 %v1683
        %v1685 = vpop.xlane.xlu0 %1684
        %v1686 = vsel %vm1642, %v1146, 0.0
        %1687 = vadd.xlane.f32.xlu0 %v1686
        %v1688 = vpop.xlane.xlu0 %1687
        %v1689 = vsel %vm1642, %v1310, 0.0
        %1690 = vadd.xlane.f32.xlu0 %v1689
        %v1691 = vpop.xlane.xlu0 %1690
        %v1692 = vsel %vm1642, %v1311, 0.0
        %1693 = vadd.xlane.f32.xlu0 %v1692
        %v1694 = vpop.xlane.xlu0 %1693
        %v1695 = vsel %vm1642, %v1475, 0.0
        %1696 = vadd.xlane.f32.xlu0 %v1695
        %v1697 = vpop.xlane.xlu0 %1696
        %v1698 = vsel %vm1642, %v1476, 0.0
        %1699 = vadd.xlane.f32.xlu0 %v1698
        %v1700 = vpop.xlane.xlu0 %1699
        %v1701 = vsel %vm1642, %v1640, 0.0
        %1702 = vadd.xlane.f32.xlu0 %v1701
        %v1703 = vpop.xlane.xlu0 %1702
        %v1704 = vsel %vm1642, %v1641, 0.0
        %1705 = vadd.xlane.f32.xlu0 %v1704
        %v1706 = vpop.xlane.xlu0 %1705
        %v1723 = vlaneseq
        %v1724 = vand.u32 %v1723, 127
        %v1725 = vlaneseq
        %v1726 = vshrl.u32 %v1725, 7
        %v1727 = vsub.s32 %v1724, %v1726
        %v1728 = vrot.slane %v1661, %v1727
        %v1729 = vadd.s32 %v1724, 4294967288
        %v1730 = vlaneseq
        %v1731 = vshrl.u32 %v1730, 7
        %v1732 = vsub.s32 %v1729, %v1731
        %v1733 = vrot.slane %v1664, %v1732
        %vm1734 = vcmask 130112
        %v1735 = vsel %vm1734, %v1733, %v1728
        %v1736 = vlaneseq
        %v1737 = vshrl.u32 %v1736, 7
        %v1738 = vsub.s32 %v1724, %v1737
        %v1739 = vrot.slane %v1667, %v1738
        %v1740 = vlaneseq
        %v1741 = vshrl.u32 %v1740, 7
        %v1742 = vsub.s32 %v1729, %v1741
        %v1743 = vrot.slane %v1670, %v1742
        %v1744 = vsel %vm1734, %v1743, %v1739
        %v1745 = vlaneseq
        %v1746 = vshrl.u32 %v1745, 7
        %v1747 = vsub.s32 %v1724, %v1746
        %v1748 = vrot.slane %v1673, %v1747
        %v1749 = vlaneseq
        %v1750 = vshrl.u32 %v1749, 7
        %v1751 = vsub.s32 %v1729, %v1750
        %v1752 = vrot.slane %v1676, %v1751
        %v1753 = vsel %vm1734, %v1752, %v1748
        %v1754 = vlaneseq
        %v1755 = vshrl.u32 %v1754, 7
        %v1756 = vsub.s32 %v1724, %v1755
        %v1757 = vrot.slane %v1679, %v1756
        %v1758 = vlaneseq
        %v1759 = vshrl.u32 %v1758, 7
        %v1760 = vsub.s32 %v1729, %v1759
        %v1761 = vrot.slane %v1682, %v1760
        %v1762 = vsel %vm1734, %v1761, %v1757
        %v1763 = vlaneseq
        %v1764 = vshrl.u32 %v1763, 7
        %v1765 = vsub.s32 %v1724, %v1764
        %v1766 = vrot.slane %v1685, %v1765
        %v1767 = vlaneseq
        %v1768 = vshrl.u32 %v1767, 7
        %v1769 = vsub.s32 %v1729, %v1768
        %v1770 = vrot.slane %v1688, %v1769
        %v1771 = vsel %vm1734, %v1770, %v1766
        %v1772 = vlaneseq
        %v1773 = vshrl.u32 %v1772, 7
        %v1774 = vsub.s32 %v1724, %v1773
        %v1775 = vrot.slane %v1691, %v1774
        %v1776 = vlaneseq
        %v1777 = vshrl.u32 %v1776, 7
        %v1778 = vsub.s32 %v1729, %v1777
        %v1779 = vrot.slane %v1694, %v1778
        %v1780 = vsel %vm1734, %v1779, %v1775
        %v1781 = vlaneseq
        %v1782 = vshrl.u32 %v1781, 7
        %v1783 = vsub.s32 %v1724, %v1782
        %v1784 = vrot.slane %v1697, %v1783
        %v1785 = vlaneseq
        %v1786 = vshrl.u32 %v1785, 7
        %v1787 = vsub.s32 %v1729, %v1786
        %v1788 = vrot.slane %v1700, %v1787
        %v1789 = vsel %vm1734, %v1788, %v1784
        %v1790 = vlaneseq
        %v1791 = vshrl.u32 %v1790, 7
        %v1792 = vsub.s32 %v1724, %v1791
        %v1793 = vrot.slane %v1703, %v1792
        %v1794 = vlaneseq
        %v1795 = vshrl.u32 %v1794, 7
        %v1796 = vsub.s32 %v1729, %v1795
        %v1797 = vrot.slane %v1706, %v1796
        %v1798 = vsel %vm1734, %v1797, %v1793
        %vm1799 = vcmask 1041409
        %v1800 = vsel %vm1799, %v1744, %v1735
        %vm1801 = vcmask 1042434
        %v1802 = vsel %vm1801, %v1753, %v1800
        %vm1803 = vcmask 1043459
        %v1804 = vsel %vm1803, %v1762, %v1802
        %vm1805 = vcmask 1044484
        %v1806 = vsel %vm1805, %v1771, %v1804
        %vm1807 = vcmask 1045509
        %v1808 = vsel %vm1807, %v1780, %v1806
        %vm1809 = vcmask 1046534
        %v1810 = vsel %vm1809, %v1789, %v1808
        %vm1811 = vcmask 1047559
        %v1812 = vsel %vm1811, %v1798, %v1810
        %v1814 = vsel %vm1642, %v1812, 0.0
        %1815 = vadd.xlane.f32.xlu0 %v1814
        %v1816 = vpop.xlane.xlu0 %1815
        %vm1817 = vcmask 7168
        %1818 = vst.msk [vmem:[%s300] sm:$0xff] %vm1817, %v1816
        %v1819 = vmul.f32 %v485, %v485
        %v1820 = vmul.f32 %v486, %v486
        %v1821 = vmul.f32 %v650, %v650
        %v1822 = vmul.f32 %v651, %v651
        %v1823 = vmul.f32 %v815, %v815
        %v1824 = vmul.f32 %v816, %v816
        %v1825 = vmul.f32 %v980, %v980
        %v1826 = vmul.f32 %v981, %v981
        %v1827 = vmul.f32 %v1145, %v1145
        %v1828 = vmul.f32 %v1146, %v1146
        %v1829 = vmul.f32 %v1310, %v1310
        %v1830 = vmul.f32 %v1311, %v1311
        %v1831 = vmul.f32 %v1475, %v1475
        %v1832 = vmul.f32 %v1476, %v1476
        %v1833 = vmul.f32 %v1640, %v1640
        %v1834 = vmul.f32 %v1641, %v1641
        %v1835 = vsel %vm1642, %v1819, 0.0
        %1836 = vadd.xlane.f32.xlu0 %v1835
        %v1837 = vpop.xlane.xlu0 %1836
        %v1838 = vsel %vm1642, %v1820, 0.0
        %1839 = vadd.xlane.f32.xlu0 %v1838
        %v1840 = vpop.xlane.xlu0 %1839
        %v1841 = vsel %vm1642, %v1821, 0.0
        %1842 = vadd.xlane.f32.xlu0 %v1841
        %v1843 = vpop.xlane.xlu0 %1842
        %v1844 = vsel %vm1642, %v1822, 0.0
        %1845 = vadd.xlane.f32.xlu0 %v1844
        %v1846 = vpop.xlane.xlu0 %1845
        %v1847 = vsel %vm1642, %v1823, 0.0
        %1848 = vadd.xlane.f32.xlu0 %v1847
        %v1849 = vpop.xlane.xlu0 %1848
        %v1850 = vsel %vm1642, %v1824, 0.0
        %1851 = vadd.xlane.f32.xlu0 %v1850
        %v1852 = vpop.xlane.xlu0 %1851
        %v1853 = vsel %vm1642, %v1825, 0.0
        %1854 = vadd.xlane.f32.xlu0 %v1853
        %v1855 = vpop.xlane.xlu0 %1854
        %v1856 = vsel %vm1642, %v1826, 0.0
        %1857 = vadd.xlane.f32.xlu0 %v1856
        %v1858 = vpop.xlane.xlu0 %1857
        %v1859 = vsel %vm1642, %v1827, 0.0
        %1860 = vadd.xlane.f32.xlu0 %v1859
        %v1861 = vpop.xlane.xlu0 %1860
        %v1862 = vsel %vm1642, %v1828, 0.0
        %1863 = vadd.xlane.f32.xlu0 %v1862
        %v1864 = vpop.xlane.xlu0 %1863
        %v1865 = vsel %vm1642, %v1829, 0.0
        %1866 = vadd.xlane.f32.xlu0 %v1865
        %v1867 = vpop.xlane.xlu0 %1866
        %v1868 = vsel %vm1642, %v1830, 0.0
        %1869 = vadd.xlane.f32.xlu0 %v1868
        %v1870 = vpop.xlane.xlu0 %1869
        %v1871 = vsel %vm1642, %v1831, 0.0
        %1872 = vadd.xlane.f32.xlu0 %v1871
        %v1873 = vpop.xlane.xlu0 %1872
        %v1874 = vsel %vm1642, %v1832, 0.0
        %1875 = vadd.xlane.f32.xlu0 %v1874
        %v1876 = vpop.xlane.xlu0 %1875
        %v1877 = vsel %vm1642, %v1833, 0.0
        %1878 = vadd.xlane.f32.xlu0 %v1877
        %v1879 = vpop.xlane.xlu0 %1878
        %v1880 = vsel %vm1642, %v1834, 0.0
        %1881 = vadd.xlane.f32.xlu0 %v1880
        %v1882 = vpop.xlane.xlu0 %1881
        %v1899 = vlaneseq
        %v1900 = vshrl.u32 %v1899, 7
        %v1901 = vsub.s32 %v1724, %v1900
        %v1902 = vrot.slane %v1837, %v1901
        %v1903 = vlaneseq
        %v1904 = vshrl.u32 %v1903, 7
        %v1905 = vsub.s32 %v1729, %v1904
        %v1906 = vrot.slane %v1840, %v1905
        %v1907 = vsel %vm1734, %v1906, %v1902
        %v1908 = vlaneseq
        %v1909 = vshrl.u32 %v1908, 7
        %v1910 = vsub.s32 %v1724, %v1909
        %v1911 = vrot.slane %v1843, %v1910
        %v1912 = vlaneseq
        %v1913 = vshrl.u32 %v1912, 7
        %v1914 = vsub.s32 %v1729, %v1913
        %v1915 = vrot.slane %v1846, %v1914
        %v1916 = vsel %vm1734, %v1915, %v1911
        %v1917 = vlaneseq
        %v1918 = vshrl.u32 %v1917, 7
        %v1919 = vsub.s32 %v1724, %v1918
        %v1920 = vrot.slane %v1849, %v1919
        %v1921 = vlaneseq
        %v1922 = vshrl.u32 %v1921, 7
        %v1923 = vsub.s32 %v1729, %v1922
        %v1924 = vrot.slane %v1852, %v1923
        %v1925 = vsel %vm1734, %v1924, %v1920
        %v1926 = vlaneseq
        %v1927 = vshrl.u32 %v1926, 7
        %v1928 = vsub.s32 %v1724, %v1927
        %v1929 = vrot.slane %v1855, %v1928
        %v1930 = vlaneseq
        %v1931 = vshrl.u32 %v1930, 7
        %v1932 = vsub.s32 %v1729, %v1931
        %v1933 = vrot.slane %v1858, %v1932
        %v1934 = vsel %vm1734, %v1933, %v1929
        %v1935 = vlaneseq
        %v1936 = vshrl.u32 %v1935, 7
        %v1937 = vsub.s32 %v1724, %v1936
        %v1938 = vrot.slane %v1861, %v1937
        %v1939 = vlaneseq
        %v1940 = vshrl.u32 %v1939, 7
        %v1941 = vsub.s32 %v1729, %v1940
        %v1942 = vrot.slane %v1864, %v1941
        %v1943 = vsel %vm1734, %v1942, %v1938
        %v1944 = vlaneseq
        %v1945 = vshrl.u32 %v1944, 7
        %v1946 = vsub.s32 %v1724, %v1945
        %v1947 = vrot.slane %v1867, %v1946
        %v1948 = vlaneseq
        %v1949 = vshrl.u32 %v1948, 7
        %v1950 = vsub.s32 %v1729, %v1949
        %v1951 = vrot.slane %v1870, %v1950
        %v1952 = vsel %vm1734, %v1951, %v1947
        %v1953 = vlaneseq
        %v1954 = vshrl.u32 %v1953, 7
        %v1955 = vsub.s32 %v1724, %v1954
        %v1956 = vrot.slane %v1873, %v1955
        %v1957 = vlaneseq
        %v1958 = vshrl.u32 %v1957, 7
        %v1959 = vsub.s32 %v1729, %v1958
        %v1960 = vrot.slane %v1876, %v1959
        %v1961 = vsel %vm1734, %v1960, %v1956
        %v1962 = vlaneseq
        %v1963 = vshrl.u32 %v1962, 7
        %v1964 = vsub.s32 %v1724, %v1963
        %v1965 = vrot.slane %v1879, %v1964
        %v1966 = vlaneseq
        %v1967 = vshrl.u32 %v1966, 7
        %v1968 = vsub.s32 %v1729, %v1967
        %v1969 = vrot.slane %v1882, %v1968
        %v1970 = vsel %vm1734, %v1969, %v1965
        %v1971 = vsel %vm1799, %v1916, %v1907
        %v1972 = vsel %vm1801, %v1925, %v1971
        %v1973 = vsel %vm1803, %v1934, %v1972
        %v1974 = vsel %vm1805, %v1943, %v1973
        %v1975 = vsel %vm1807, %v1952, %v1974
        %v1976 = vsel %vm1809, %v1961, %v1975
        %v1977 = vsel %vm1811, %v1970, %v1976
        %v1979 = vsel %vm1642, %v1977, 0.0
        %1980 = vadd.xlane.f32.xlu0 %v1979
        %v1981 = vpop.xlane.xlu0 %1980
        %1982 = vst.msk [vmem:[%s304] sm:$0xff] %vm1817, %v1981
        %s1983 = sand.u32 %s122, 1
        %s1984 = scalar_lea.sflag [#allocation4], %s1983
        %s1985 = sand.u32 %s122, 1
        %s1986 = smul.addr %s1985, 128
        %s1987 = scalar_lea.vmem [#allocation7], %s1986
        %p1988 = scmp.lt.s32.totalorder %s25, 1
        %s1989 = scalar_select %p1988, %s25, 1
        %s1990 = smul.addr %s1989, 8
        %s1991 = scalar_lea.vmem %s5, %s1990
        %p1992 = scmp.lt.s32.totalorder %s25, 1
        %s1993 = scalar_select %p1992, %s25, 1
        %s1994 = smul.addr %s1993, 8
        %s1995 = scalar_lea.vmem %s6, %s1994
        // Predicated region
        $region45: #{tpu_custom_call.1} parent=35 // pred_check
          %p1996 = pneg %p132
        $region46: #{tpu_custom_call.1} parent=35 // pred_check_branch
          %1998 = sbr.rel (%p1996) target = $region48
        $region47: #{tpu_custom_call.1} parent=35 // pred_region
          %s2000 = ssub.s32 2048, 2048
          %2001 = vsyncadd %s1984, %s2000
          %s2002 = smul.addr %s25, 16
          %s2003 = smul.addr %s2002, 128
          %s2004 = scalar_lea.hbm %s4, %s2003
          %s2005 = sshll.u32 %s1987, 4
          %s2006 = int_to_ptr.vmem [resolvable:$true] %s2005
          %2011 = dma.vmem_to_hbm [thread:$0]  %s2006, 2048, %s2004, %s1984, 128, 128, 8
        $region48: #{tpu_custom_call.1} parent=35 // pred_fallthru
          _
        // Predicated region
        $region49: #{tpu_custom_call.1} parent=35 // pred_check
          %p2012 = pneg %p158
        $region50: #{tpu_custom_call.1} parent=35 // pred_check_branch
          %2014 = sbr.rel (%p2012) target = $region52
        $region51: #{tpu_custom_call.1} parent=35 // pred_region
          _
        $region52: #{tpu_custom_call.1} parent=35 // pred_fallthru
          _
        // Predicated region
        $region53: #{tpu_custom_call.1} parent=35 // pred_check
          %p2015 = pneg %p184
        $region54: #{tpu_custom_call.1} parent=35 // pred_check_branch
          %2017 = sbr.rel (%p2015) target = $region56
        $region55: #{tpu_custom_call.1} parent=35 // pred_region
          _
        $region56: #{tpu_custom_call.1} parent=35 // pred_fallthru
          _
      $region36: #{tpu_custom_call.1} parent=5 // pred_fallthru
        _
      %p2018 = scmp.le.s32.totalorder 2, %s20
      // Predicated region
      $region57: #{tpu_custom_call.1} parent=5 // pred_check
        %p2019 = pneg %p2018
      $region58: #{tpu_custom_call.1} parent=5 // pred_check_branch
        %2021 = sbr.rel (%p2019) target = $region60
      $region59: #{tpu_custom_call.1} parent=5 // pred_region
        %s2022 = ssub.s32 %s20, 2
        // Predicated region
        $region61: #{tpu_custom_call.1} parent=59 // pred_check
          %p2023 = pneg %p138
        $region62: #{tpu_custom_call.1} parent=59 // pred_check_branch
          %2025 = sbr.rel (%p2023) target = $region64
        $region63: #{tpu_custom_call.1} parent=59 // pred_region
          %s2026 = sand.u32 %s123, 1
          %s2027 = scalar_lea.sflag [#allocation4], %s2026
          %s2028 = sand.u32 %s123, 1
          %s2029 = smul.addr %s2028, 128
          %s2030 = scalar_lea.vmem [#allocation7], %s2029
          %2031 = dma.done %s2027, 2048
        $region64: #{tpu_custom_call.1} parent=59 // pred_fallthru
          _
        // Predicated region
        $region65: #{tpu_custom_call.1} parent=59 // pred_check
          %p2032 = pneg %p164
        $region66: #{tpu_custom_call.1} parent=59 // pred_check_branch
          %2034 = sbr.rel (%p2032) target = $region68
        $region67: #{tpu_custom_call.1} parent=59 // pred_region
          %p2035 = scmp.lt.s32.totalorder %s26, 1
          %s2036 = scalar_select %p2035, %s26, 1
          %s2037 = smul.addr %s2036, 8
          %s2038 = scalar_lea.vmem %s5, %s2037
        $region68: #{tpu_custom_call.1} parent=59 // pred_fallthru
          _
        // Predicated region
        $region69: #{tpu_custom_call.1} parent=59 // pred_check
          %p2039 = pneg %p190
        $region70: #{tpu_custom_call.1} parent=59 // pred_check_branch
          %2041 = sbr.rel (%p2039) target = $region72
        $region71: #{tpu_custom_call.1} parent=59 // pred_region
          %p2042 = scmp.lt.s32.totalorder %s26, 1
          %s2043 = scalar_select %p2042, %s26, 1
          %s2044 = smul.addr %s2043, 8
          %s2045 = scalar_lea.vmem %s6, %s2044
        $region72: #{tpu_custom_call.1} parent=59 // pred_fallthru
          _
      $region60: #{tpu_custom_call.1} parent=5 // pred_fallthru
        _
    $region6: #{tpu_custom_call.1} parent=1 // loop_footer
      %s24 = sadd.s32 1, %s20
    $region7: #{tpu_custom_call.1} parent=1 // loop_footer_branch
      %19 = sbr.rel target = $region3
    $region8: #{tpu_custom_call.1} parent=1 // loop_exit
      _
    %2046 = vsyncpa [#allocation3], 1
    %s2047 = scalar_lea.sflag [#allocation3], 1
    %2048 = vsyncpa %s2047, 1
    %2049 = vsyncpa [#allocation4], 1
    %s2050 = scalar_lea.sflag [#allocation4], 1
    %2051 = vsyncpa %s2050, 1
    %2052 = vsyncpa [#allocation5], 1
    %s2053 = scalar_lea.sflag [#allocation5], 1
    %2054 = vsyncpa %s2053, 1

</llo_original>
